<compile_context>
chip_gen: v6e
topology: v6e:2x2x1
jax: 0.10.0
libtpu: 0.0.40
codegen_flags: <defaults>
</compile_context>

<pallas_src>
import math

import jax
import jax.numpy as jnp
from jax import lax
from jax.experimental import pallas as pl
from jax.experimental.pallas import tpu as pltpu


def _attn_head_kernel(xq_ref, xkv_ref, wq_ref, wk_ref, wv_ref,
                      bq_ref, bk_ref, bv_ref, o_ref):
    """One (batch, head, q-tile) per grid step.

    xq_ref : (1, tq, C)  bf16   query-tile tokens
    xkv_ref: (1, S,  C)  bf16   all tokens (for K / V)
    w*_ref : (1, C,  d)  bf16   per-head projection weights (scale folded into wq)
    b*_ref : (1, 1,  d)  f32    per-head projection bias    (scale folded into bq)
    o_ref  : (1, 1, tq, d) f32  per-head attention output (pre-residual)
    """
    xq = xq_ref[0]                       # (tq, C) bf16
    xkv = xkv_ref[0]                     # (S,  C) bf16

    # Projections: bf16 operands, f32 accumulation, bias add in f32.
    q = (jnp.dot(xq, wq_ref[0], preferred_element_type=jnp.float32)
         + bq_ref[0]).astype(jnp.bfloat16)                      # (tq, d)
    k = (jnp.dot(xkv, wk_ref[0], preferred_element_type=jnp.float32)
         + bk_ref[0]).astype(jnp.bfloat16)                      # (S, d)
    v = (jnp.dot(xkv, wv_ref[0], preferred_element_type=jnp.float32)
         + bv_ref[0]).astype(jnp.bfloat16)                      # (S, d)

    # Scores: contract last dims directly (no k.T). Scale already folded in.
    s = lax.dot_general(q, k, (((1,), (1,)), ((), ())),
                        preferred_element_type=jnp.float32)     # (tq, S) f32

    # Numerically stable softmax, all f32 (VPU/EUP).
    m = jnp.max(s, axis=-1, keepdims=True)
    p = jnp.exp(s - m)
    l = jnp.sum(p, axis=-1, keepdims=True)
    p = p * pl.reciprocal(l, approx=True)

    out = jnp.dot(p.astype(jnp.bfloat16), v,
                  preferred_element_type=jnp.float32)           # (tq, d) f32
    o_ref[0, 0] = out.astype(o_ref.dtype)


def _pick_q_tile(S):
    for cand in (512, 256, 128):
        if S % cand == 0:
            return cand
    return S


def attention_forward(x_nchw, weight, bias, n_heads=2):
    """Forward matching torch `Attention.forward`.

    x_nchw : (B, C, H, W) float32
    weight : (3C, C)  torch nn.Linear weight layout (out_features, in_features)
    bias   : (3C,)
    """
    B, C, H, W = x_nchw.shape
    S = H * W
    assert C % n_heads == 0
    d = C // n_heads
    scale = C ** 0.5                     # module scales by sqrt(embed_dim)

    # ---- layout plumbing (plain JAX, outside the kernel) ----------------
    # NCHW -> (B, S, C) token layout; keep an f32 copy for the residual.
    x_f32 = jnp.transpose(x_nchw.reshape(B, C, S), (0, 2, 1)).astype(jnp.float32)
    x_bf16 = x_f32.astype(jnp.bfloat16)

    # Torch chunking: the 3C output columns decompose as (n_heads, [q|k|v], d).
    w_t = jnp.asarray(weight, jnp.float32).T.reshape(C, n_heads, 3, d)
    b_h = jnp.asarray(bias, jnp.float32).reshape(n_heads, 3, d)

    wq = (jnp.transpose(w_t[:, :, 0, :], (1, 0, 2)) / scale).astype(jnp.bfloat16)
    wk = jnp.transpose(w_t[:, :, 1, :], (1, 0, 2)).astype(jnp.bfloat16)
    wv = jnp.transpose(w_t[:, :, 2, :], (1, 0, 2)).astype(jnp.bfloat16)
    bq = (b_h[:, 0, :] / scale).reshape(n_heads, 1, d).astype(jnp.float32)
    bk = b_h[:, 1, :].reshape(n_heads, 1, d).astype(jnp.float32)
    bv = b_h[:, 2, :].reshape(n_heads, 1, d).astype(jnp.float32)

    tq = _pick_q_tile(S)
    nq = S // tq

    cost = pl.CostEstimate(
        flops=B * n_heads * (6 * S * C * d + 4 * S * S * d),
        transcendentals=B * n_heads * S * S,
        bytes_accessed=4 * B * S * C * (n_heads + 2),
    )

    out_heads = pl.pallas_call(
        _attn_head_kernel,
        out_shape=jax.ShapeDtypeStruct((B, n_heads, S, d), jnp.float32),
        grid_spec=pltpu.PrefetchScalarGridSpec(
            num_scalar_prefetch=0,
            grid=(B, n_heads, nq),
            in_specs=[
                pl.BlockSpec((1, tq, C), lambda b, h, qi: (b, qi, 0)),   # x (q tile)
                pl.BlockSpec((1, S, C), lambda b, h, qi: (b, 0, 0)),     # x (full, K/V)
                pl.BlockSpec((1, C, d), lambda b, h, qi: (h, 0, 0)),     # wq
                pl.BlockSpec((1, C, d), lambda b, h, qi: (h, 0, 0)),     # wk
                pl.BlockSpec((1, C, d), lambda b, h, qi: (h, 0, 0)),     # wv
                pl.BlockSpec((1, 1, d), lambda b, h, qi: (h, 0, 0)),     # bq
                pl.BlockSpec((1, 1, d), lambda b, h, qi: (h, 0, 0)),     # bk
                pl.BlockSpec((1, 1, d), lambda b, h, qi: (h, 0, 0)),     # bv
            ],
            out_specs=pl.BlockSpec((1, 1, tq, d),
                                   lambda b, h, qi: (b, h, qi, 0)),
        ),
        compiler_params=pltpu.CompilerParams(
            dimension_semantics=("parallel", "parallel", "parallel"),
            vmem_limit_bytes=32 * 1024 * 1024),
        cost_estimate=cost,
    )(x_bf16, x_bf16, wq, wk, wv, bq, bk, bv)

    # (B, n_heads, S, d) -> (B, S, C), residual in f32, then the torch-style
    # *raw* memory reshape of the (B, S, C) result to (B, C, H, W).
    attn = jnp.transpose(out_heads, (0, 2, 1, 3)).reshape(B, S, C)
    out = attn + x_f32
    return out.reshape(B, C, H, W)


def _reference_forward(x_nchw, weight, bias, n_heads=2):
    """Pure-JAX (f32) replica of the PyTorch forward, for verification."""
    B, C, H, W = x_nchw.shape
    S = H * W
    x = jnp.transpose(x_nchw.reshape(B, C, S), (0, 2, 1))            # (B, S, C)
    qkv = x @ weight.T + bias                                        # (B, S, 3C)
    sub_dim = (3 * C) // n_heads
    qkv = qkv.reshape(B, S, n_heads, sub_dim)
    q, k, v = jnp.split(qkv, 3, axis=-1)                             # (B, S, H, d)
    q = jnp.transpose(q, (0, 2, 1, 3))
    k = jnp.transpose(k, (0, 2, 1, 3))
    v = jnp.transpose(v, (0, 2, 1, 3))
    s = jnp.einsum("bhqd,bhkd->bhqk", q, k) / (C ** 0.5)
    p = jax.nn.softmax(s, axis=-1)
    o = jnp.einsum("bhqk,bhkd->bhqd", p, v)
    o = jnp.transpose(o, (0, 2, 1, 3)).reshape(B, S, C) + x
    return o.reshape(B, C, H, W)


if __name__ == "__main__":
    B, C, H, W = 2, 4, 16, 16
    n_heads = 2

    key = jax.random.PRNGKey(0)
    kx, kw, kb = jax.random.split(key, 3)

    x = jax.random.normal(kx, (B, C, H, W), dtype=jnp.float32)

    # deterministic Linear(C -> 3C) init, PyTorch-style uniform(+-1/sqrt(C))
    bound = 1.0 / math.sqrt(C)
    weight = jax.random.uniform(kw, (3 * C, C), jnp.float32, -bound, bound)
    bias = jax.random.uniform(kb, (3 * C,), jnp.float32, -bound, bound)

    out = attention_forward(x, weight, bias, n_heads=n_heads)
    out = jax.block_until_ready(out)

    ref = _reference_forward(x, weight, bias, n_heads=n_heads)
    assert out.shape == (B, C, H, W)
    # bf16 MXU operands + approx reciprocal -> loosen vs the f32 reference.
    assert jnp.allclose(out, ref, atol=2e-2, rtol=2e-2), "mismatch vs reference"

    print("KERNEL_OK")
</pallas_src>

<mosaic_0001>
module attributes {stable_mosaic.version = 11 : i64} {
  func.func @_attn_head_kernel(%arg0: i32, %arg1: i32, %arg2: i32, %arg3: memref<1x256x4xbf16, #tpu.memory_space<vmem>>, %arg4: memref<1x256x4xbf16, #tpu.memory_space<vmem>>, %arg5: memref<1x4x2xbf16, #tpu.memory_space<vmem>>, %arg6: memref<1x4x2xbf16, #tpu.memory_space<vmem>>, %arg7: memref<1x4x2xbf16, #tpu.memory_space<vmem>>, %arg8: memref<1x1x2xf32, #tpu.memory_space<vmem>>, %arg9: memref<1x1x2xf32, #tpu.memory_space<vmem>>, %arg10: memref<1x1x2xf32, #tpu.memory_space<vmem>>, %arg11: memref<1x1x256x2xf32, #tpu.memory_space<vmem>>) attributes {dimension_semantics = [#tpu.dimension_semantics<parallel>, #tpu.dimension_semantics<parallel>, #tpu.dimension_semantics<parallel>], iteration_bounds = array<i64: 2, 2, 1>, scalar_prefetch = 0 : i64, scratch_operands = 0 : i64, tpu.core_type = #tpu.core_type<tc>, window_params = [{transform_indices = @transform_0, window_bounds = array<i64: 1, 256, 4>}, {transform_indices = @transform_1, window_bounds = array<i64: 1, 256, 4>}, {transform_indices = @transform_2, window_bounds = array<i64: 1, 4, 2>}, {transform_indices = @transform_3, window_bounds = array<i64: 1, 4, 2>}, {transform_indices = @transform_4, window_bounds = array<i64: 1, 4, 2>}, {transform_indices = @transform_5, window_bounds = array<i64: 1, 1, 2>}, {transform_indices = @transform_6, window_bounds = array<i64: 1, 1, 2>}, {transform_indices = @transform_7, window_bounds = array<i64: 1, 1, 2>}, {transform_indices = @transform_8, window_bounds = array<i64: 1, 1, 256, 2>}]} {
    %c0 = arith.constant 0 : index
    %c0_0 = arith.constant 0 : index
    %c0_1 = arith.constant 0 : index
    %0 = vector.load %arg3[%c0, %c0_0, %c0_1] : memref<1x256x4xbf16, #tpu.memory_space<vmem>>, vector<1x256x4xbf16>
    %1 = vector.shape_cast %0 : vector<1x256x4xbf16> to vector<256x4xbf16>
    %c0_2 = arith.constant 0 : index
    %c0_3 = arith.constant 0 : index
    %c0_4 = arith.constant 0 : index
    %2 = vector.load %arg4[%c0_2, %c0_3, %c0_4] : memref<1x256x4xbf16, #tpu.memory_space<vmem>>, vector<1x256x4xbf16>
    %3 = vector.shape_cast %2 : vector<1x256x4xbf16> to vector<256x4xbf16>
    %c0_5 = arith.constant 0 : index
    %c0_6 = arith.constant 0 : index
    %c0_7 = arith.constant 0 : index
    %4 = vector.load %arg5[%c0_5, %c0_6, %c0_7] : memref<1x4x2xbf16, #tpu.memory_space<vmem>>, vector<1x4x2xbf16>
    %5 = vector.shape_cast %4 : vector<1x4x2xbf16> to vector<4x2xbf16>
    %cst = arith.constant dense<0.000000e+00> : vector<256x2xf32>
    %6 = tpu.matmul %1, %5, %cst {dimension_numbers = #tpu.dot_dimension_numbers<[1], [0], [0], [1], [0, 0, 1, 1], [], []>} : vector<256x4xbf16>, vector<4x2xbf16>, vector<256x2xf32> -> vector<256x2xf32>
    %c0_8 = arith.constant 0 : index
    %c0_9 = arith.constant 0 : index
    %c0_10 = arith.constant 0 : index
    %7 = vector.load %arg8[%c0_8, %c0_9, %c0_10] : memref<1x1x2xf32, #tpu.memory_space<vmem>>, vector<1x1x2xf32>
    %8 = vector.shape_cast %7 : vector<1x1x2xf32> to vector<1x2xf32>
    %9 = vector.broadcast %8 : vector<1x2xf32> to vector<256x2xf32>
    %10 = arith.addf %6, %9 : vector<256x2xf32>
    %11 = arith.truncf %10 : vector<256x2xf32> to vector<256x2xbf16>
    %c0_11 = arith.constant 0 : index
    %c0_12 = arith.constant 0 : index
    %c0_13 = arith.constant 0 : index
    %12 = vector.load %arg6[%c0_11, %c0_12, %c0_13] : memref<1x4x2xbf16, #tpu.memory_space<vmem>>, vector<1x4x2xbf16>
    %13 = vector.shape_cast %12 : vector<1x4x2xbf16> to vector<4x2xbf16>
    %cst_14 = arith.constant dense<0.000000e+00> : vector<256x2xf32>
    %14 = tpu.matmul %3, %13, %cst_14 {dimension_numbers = #tpu.dot_dimension_numbers<[1], [0], [0], [1], [0, 0, 1, 1], [], []>} : vector<256x4xbf16>, vector<4x2xbf16>, vector<256x2xf32> -> vector<256x2xf32>
    %c0_15 = arith.constant 0 : index
    %c0_16 = arith.constant 0 : index
    %c0_17 = arith.constant 0 : index
    %15 = vector.load %arg9[%c0_15, %c0_16, %c0_17] : memref<1x1x2xf32, #tpu.memory_space<vmem>>, vector<1x1x2xf32>
    %16 = vector.shape_cast %15 : vector<1x1x2xf32> to vector<1x2xf32>
    %17 = vector.broadcast %16 : vector<1x2xf32> to vector<256x2xf32>
    %18 = arith.addf %14, %17 : vector<256x2xf32>
    %19 = arith.truncf %18 : vector<256x2xf32> to vector<256x2xbf16>
    %c0_18 = arith.constant 0 : index
    %c0_19 = arith.constant 0 : index
    %c0_20 = arith.constant 0 : index
    %20 = vector.load %arg7[%c0_18, %c0_19, %c0_20] : memref<1x4x2xbf16, #tpu.memory_space<vmem>>, vector<1x4x2xbf16>
    %21 = vector.shape_cast %20 : vector<1x4x2xbf16> to vector<4x2xbf16>
    %cst_21 = arith.constant dense<0.000000e+00> : vector<256x2xf32>
    %22 = tpu.matmul %3, %21, %cst_21 {dimension_numbers = #tpu.dot_dimension_numbers<[1], [0], [0], [1], [0, 0, 1, 1], [], []>} : vector<256x4xbf16>, vector<4x2xbf16>, vector<256x2xf32> -> vector<256x2xf32>
    %c0_22 = arith.constant 0 : index
    %c0_23 = arith.constant 0 : index
    %c0_24 = arith.constant 0 : index
    %23 = vector.load %arg10[%c0_22, %c0_23, %c0_24] : memref<1x1x2xf32, #tpu.memory_space<vmem>>, vector<1x1x2xf32>
    %24 = vector.shape_cast %23 : vector<1x1x2xf32> to vector<1x2xf32>
    %25 = vector.broadcast %24 : vector<1x2xf32> to vector<256x2xf32>
    %26 = arith.addf %22, %25 : vector<256x2xf32>
    %27 = arith.truncf %26 : vector<256x2xf32> to vector<256x2xbf16>
    %cst_25 = arith.constant dense<0.000000e+00> : vector<256x256xf32>
    %28 = tpu.matmul %11, %19, %cst_25 {dimension_numbers = #tpu.dot_dimension_numbers<[1], [1], [0], [0], [0, 0, 1, 0], [], []>} : vector<256x2xbf16>, vector<256x2xbf16>, vector<256x256xf32> -> vector<256x256xf32>
    %cst_26 = arith.constant dense<0xFF800000> : vector<256xf32>
    %29 = vector.multi_reduction <maximumf>, %28, %cst_26 [1] : vector<256x256xf32> to vector<256xf32>
    %30 = vector.shape_cast %29 : vector<256xf32> to vector<256x1xf32>
    %31 = vector.broadcast %30 : vector<256x1xf32> to vector<256x256xf32>
    %32 = arith.subf %28, %31 : vector<256x256xf32>
    %33 = math.exp %32 : vector<256x256xf32>
    %cst_27 = arith.constant dense<0.000000e+00> : vector<256xf32>
    %34 = vector.multi_reduction <add>, %33, %cst_27 [1] : vector<256x256xf32> to vector<256xf32>
    %35 = vector.shape_cast %34 : vector<256xf32> to vector<256x1xf32>
    %36 = tpu.reciprocal %35 {approx = true} : vector<256x1xf32> -> vector<256x1xf32>
    %37 = vector.broadcast %36 : vector<256x1xf32> to vector<256x256xf32>
    %38 = arith.mulf %33, %37 : vector<256x256xf32>
    %39 = arith.truncf %38 : vector<256x256xf32> to vector<256x256xbf16>
    %cst_28 = arith.constant dense<0.000000e+00> : vector<256x2xf32>
    %40 = tpu.matmul %39, %27, %cst_28 {dimension_numbers = #tpu.dot_dimension_numbers<[1], [0], [0], [1], [0, 0, 1, 1], [], []>} : vector<256x256xbf16>, vector<256x2xbf16>, vector<256x2xf32> -> vector<256x2xf32>
    %c0_29 = arith.constant 0 : index
    %c0_30 = arith.constant 0 : index
    %c0_31 = arith.constant 0 : index
    %c0_32 = arith.constant 0 : index
    %41 = vector.load %arg11[%c0_29, %c0_30, %c0_31, %c0_32] : memref<1x1x256x2xf32, #tpu.memory_space<vmem>>, vector<1x1x256x2xf32>
    %42 = vector.shape_cast %41 : vector<1x1x256x2xf32> to vector<256x2xf32>
    %43 = vector.shape_cast %40 : vector<256x2xf32> to vector<1x1x256x2xf32>
    tpu.vector_store %arg11[%c0_29, %c0_30, %c0_31, %c0_32], %43 {strides = array<i32>} : memref<1x1x256x2xf32, #tpu.memory_space<vmem>>, vector<1x1x256x2xf32>,
    return
  }
  func.func @transform_0(%arg0: i32, %arg1: i32, %arg2: i32) -> (i32, i32, i32) {
    %c0_i32 = arith.constant 0 : i32
    %c0_i32_0 = arith.constant 0 : i32
    return %arg0, %arg2, %c0_i32 : i32, i32, i32
  }
  func.func @transform_1(%arg0: i32, %arg1: i32, %arg2: i32) -> (i32, i32, i32) {
    %c0_i32 = arith.constant 0 : i32
    %c0_i32_0 = arith.constant 0 : i32
    %c0_i32_1 = arith.constant 0 : i32
    return %arg0, %c0_i32, %c0_i32_0 : i32, i32, i32
  }
  func.func @transform_2(%arg0: i32, %arg1: i32, %arg2: i32) -> (i32, i32, i32) {
    %c0_i32 = arith.constant 0 : i32
    %c0_i32_0 = arith.constant 0 : i32
    %c0_i32_1 = arith.constant 0 : i32
    return %arg1, %c0_i32, %c0_i32_0 : i32, i32, i32
  }
  func.func @transform_3(%arg0: i32, %arg1: i32, %arg2: i32) -> (i32, i32, i32) {
    %c0_i32 = arith.constant 0 : i32
    %c0_i32_0 = arith.constant 0 : i32
    %c0_i32_1 = arith.constant 0 : i32
    return %arg1, %c0_i32, %c0_i32_0 : i32, i32, i32
  }
  func.func @transform_4(%arg0: i32, %arg1: i32, %arg2: i32) -> (i32, i32, i32) {
    %c0_i32 = arith.constant 0 : i32
    %c0_i32_0 = arith.constant 0 : i32
    %c0_i32_1 = arith.constant 0 : i32
    return %arg1, %c0_i32, %c0_i32_0 : i32, i32, i32
  }
  func.func @transform_5(%arg0: i32, %arg1: i32, %arg2: i32) -> (i32, i32, i32) {
    %c0_i32 = arith.constant 0 : i32
    %c0_i32_0 = arith.constant 0 : i32
    %c0_i32_1 = arith.constant 0 : i32
    return %arg1, %c0_i32, %c0_i32_0 : i32, i32, i32
  }
  func.func @transform_6(%arg0: i32, %arg1: i32, %arg2: i32) -> (i32, i32, i32) {
    %c0_i32 = arith.constant 0 : i32
    %c0_i32_0 = arith.constant 0 : i32
    %c0_i32_1 = arith.constant 0 : i32
    return %arg1, %c0_i32, %c0_i32_0 : i32, i32, i32
  }
  func.func @transform_7(%arg0: i32, %arg1: i32, %arg2: i32) -> (i32, i32, i32) {
    %c0_i32 = arith.constant 0 : i32
    %c0_i32_0 = arith.constant 0 : i32
    %c0_i32_1 = arith.constant 0 : i32
    return %arg1, %c0_i32, %c0_i32_0 : i32, i32, i32
  }
  func.func @transform_8(%arg0: i32, %arg1: i32, %arg2: i32) -> (i32, i32, i32, i32) {
    %c0_i32 = arith.constant 0 : i32
    %c0_i32_0 = arith.constant 0 : i32
    return %arg0, %arg1, %arg2, %c0_i32 : i32, i32, i32, i32
  }
}

</mosaic_0001>

<llo_original>
// kernel: tpu_custom_call.1
$region0: #{tpu_custom_call.1}
  #allocation0 [shape = 'u32[]', space=smem, size = 0x4, offset = 0x4, fixed_abs, tag = 'smem constant byte address 0x4 - core index']
  #allocation1 [shape = 'u32[144,128]{1,0:T(1,128)}', space=vmem, size = 0x12000, scoped, tag = 'internal scratch']
  %s0 = inlined_call_operand.vmem [shape: bf16[2,256,4], index: 0, kind: input, shape index: {}]
  %s1 = inlined_call_operand.vmem [shape: bf16[2,256,4], index: 1, kind: input, shape index: {}]
  %s2 = inlined_call_operand.vmem [shape: bf16[2,4,2], index: 2, kind: input, shape index: {}]
  %s3 = inlined_call_operand.vmem [shape: bf16[2,4,2], index: 3, kind: input, shape index: {}]
  %s4 = inlined_call_operand.vmem [shape: bf16[2,4,2], index: 4, kind: input, shape index: {}]
  %s5 = inlined_call_operand.vmem [shape: f32[2,1,2], index: 5, kind: input, shape index: {}]
  %s6 = inlined_call_operand.vmem [shape: f32[2,1,2], index: 6, kind: input, shape index: {}]
  %s7 = inlined_call_operand.vmem [shape: f32[2,1,2], index: 7, kind: input, shape index: {}]
  %s8 = inlined_call_operand.vmem [shape: f32[2,2,256,2], index: 8, kind: output, shape index: {}]
  %s9 = sld [smem:[#allocation0]]
  $region65: #{tpu_custom_call.1} parent=0
    _
  %s11 = ssub.s32 1, %s9
  %s12 = scalar_select 0, %s11, %s9
  loop: start=0, step=1, limit=6
  $region2: #{tpu_custom_call.1} parent=0 // loop_pre_header
    _
  $region3: #{tpu_custom_call.1} parent=0 // loop_header
    %s14 = sphi 0, %s18
    %p15 = scmp.ge.s32.totalorder %s14, 6
    %s21 = sphi 0, %s40
    %s22 = sphi 0, %s36
    %s23 = sphi 0, %s32
    %s24 = sphi 0, %s21
    %s25 = sphi 0, %s22
    %s26 = sphi 0, %s23
    %s27 = sphi 0, %s24
    %s28 = sphi 0, %s25
    %s29 = sphi 0, %s26
    %s45 = sphi 0, %s47
    %s48 = sphi 0, %s45
    %s49 = sphi 0, %s48
    %s65 = sphi 0, %s49
    %s71 = sphi 0, %s73
    %s74 = sphi 0, %s71
    %s75 = sphi 0, %s74
    %s91 = sphi 0, %s75
    %s97 = sphi 0, %s99
    %s100 = sphi 0, %s97
    %s101 = sphi 0, %s100
    %s117 = sphi 0, %s101
    %s123 = sphi 0, %s125
    %s126 = sphi 0, %s123
    %s127 = sphi 0, %s126
    %s143 = sphi 0, %s127
    %s149 = sphi 0, %s151
    %s152 = sphi 0, %s149
    %s153 = sphi 0, %s152
    %s169 = sphi 0, %s153
    %s175 = sphi 0, %s177
    %s178 = sphi 0, %s175
    %s179 = sphi 0, %s178
    %s195 = sphi 0, %s179
    %s201 = sphi 0, %s203
    %s204 = sphi 0, %s201
    %s205 = sphi 0, %s204
    %s221 = sphi 0, %s205
    %s227 = sphi 0, %s229
    %s230 = sphi 0, %s227
    %s231 = sphi 0, %s230
    %s247 = sphi 0, %s231
    %s257 = sphi 0, %s259
    %s260 = sphi 0, %s257
    %s261 = sphi 0, %s260
    %s277 = sphi 0, %s261
  $region4: #{tpu_custom_call.1} parent=0 // loop_header_branch
    %17 = sbr.rel (%p15) target = $region8
  $region5: #{tpu_custom_call.1} parent=0 // loop_body
    %s19 = ssub.s32 %s14, 1
    %s20 = ssub.s32 %s14, 2
    %s30 = sadd.s32 1, %s23
    %p31 = scmp.ge.s32.totalorder %s30, 1
    %s32 = scalar_select %p31, 0, %s30
    %s33 = sadd.s32 1, %s22
    %s34 = scalar_select %p31, %s33, %s22
    %p35 = scmp.ge.s32.totalorder %s34, 2
    %s36 = scalar_select %p35, 0, %s34
    %s37 = sadd.s32 1, %s21
    %s38 = scalar_select %p35, %s37, %s21
    %p39 = scmp.ge.s32.totalorder %s38, 2
    %s40 = scalar_select %p39, 0, %s38
    %s41 = ssub.s32 %s21, %s40
    %s42 = ssub.s32 %s23, %s32
    %s43 = sor.u32 %s41, %s42
    %p44 = scmp.eq.s32.totalorder %s43, 0
    %s46 = sadd.s32 %s45, 1
    %s47 = scalar_select %p44, %s45, %s46
    %p50 = pneg %p44
    %p51 = scmp.eq.s32.totalorder %s14, 3
    %p52 = por %p50, %p51
    %p53 = scmp.ne.s32.totalorder %s45, %s48
    %p54 = scmp.eq.s32.totalorder %s14, 0
    %p55 = por %p53, %p54
    %p56 = scmp.ne.s32.totalorder %s45, %s48
    %p57 = scmp.eq.s32.totalorder %s19, 3
    %p58 = por %p56, %p57
    %p59 = scmp.ne.s32.totalorder %s48, %s49
    %p60 = scmp.eq.s32.totalorder %s19, 0
    %p61 = por %p59, %p60
    %p62 = scmp.ne.s32.totalorder %s48, %s49
    %p63 = scmp.eq.s32.totalorder %s20, 3
    %p64 = por %p62, %p63
    %p66 = scmp.ne.s32.totalorder %s49, %s65
    %p67 = scmp.eq.s32.totalorder %s20, 0
    %p68 = por %p66, %p67
    %s69 = ssub.s32 %s21, %s40
    %p70 = scmp.eq.s32.totalorder %s69, 0
    %s72 = sadd.s32 %s71, 1
    %s73 = scalar_select %p70, %s71, %s72
    %p76 = pneg %p70
    %p77 = scmp.eq.s32.totalorder %s14, 3
    %p78 = por %p76, %p77
    %p79 = scmp.ne.s32.totalorder %s71, %s74
    %p80 = scmp.eq.s32.totalorder %s14, 0
    %p81 = por %p79, %p80
    %p82 = scmp.ne.s32.totalorder %s71, %s74
    %p83 = scmp.eq.s32.totalorder %s19, 3
    %p84 = por %p82, %p83
    %p85 = scmp.ne.s32.totalorder %s74, %s75
    %p86 = scmp.eq.s32.totalorder %s19, 0
    %p87 = por %p85, %p86
    %p88 = scmp.ne.s32.totalorder %s74, %s75
    %p89 = scmp.eq.s32.totalorder %s20, 3
    %p90 = por %p88, %p89
    %p92 = scmp.ne.s32.totalorder %s75, %s91
    %p93 = scmp.eq.s32.totalorder %s20, 0
    %p94 = por %p92, %p93
    %s95 = ssub.s32 %s22, %s36
    %p96 = scmp.eq.s32.totalorder %s95, 0
    %s98 = sadd.s32 %s97, 1
    %s99 = scalar_select %p96, %s97, %s98
    %p102 = pneg %p96
    %p103 = scmp.eq.s32.totalorder %s14, 3
    %p104 = por %p102, %p103
    %p105 = scmp.ne.s32.totalorder %s97, %s100
    %p106 = scmp.eq.s32.totalorder %s14, 0
    %p107 = por %p105, %p106
    %p108 = scmp.ne.s32.totalorder %s97, %s100
    %p109 = scmp.eq.s32.totalorder %s19, 3
    %p110 = por %p108, %p109
    %p111 = scmp.ne.s32.totalorder %s100, %s101
    %p112 = scmp.eq.s32.totalorder %s19, 0
    %p113 = por %p111, %p112
    %p114 = scmp.ne.s32.totalorder %s100, %s101
    %p115 = scmp.eq.s32.totalorder %s20, 3
    %p116 = por %p114, %p115
    %p118 = scmp.ne.s32.totalorder %s101, %s117
    %p119 = scmp.eq.s32.totalorder %s20, 0
    %p120 = por %p118, %p119
    %s121 = ssub.s32 %s22, %s36
    %p122 = scmp.eq.s32.totalorder %s121, 0
    %s124 = sadd.s32 %s123, 1
    %s125 = scalar_select %p122, %s123, %s124
    %p128 = pneg %p122
    %p129 = scmp.eq.s32.totalorder %s14, 3
    %p130 = por %p128, %p129
    %p131 = scmp.ne.s32.totalorder %s123, %s126
    %p132 = scmp.eq.s32.totalorder %s14, 0
    %p133 = por %p131, %p132
    %p134 = scmp.ne.s32.totalorder %s123, %s126
    %p135 = scmp.eq.s32.totalorder %s19, 3
    %p136 = por %p134, %p135
    %p137 = scmp.ne.s32.totalorder %s126, %s127
    %p138 = scmp.eq.s32.totalorder %s19, 0
    %p139 = por %p137, %p138
    %p140 = scmp.ne.s32.totalorder %s126, %s127
    %p141 = scmp.eq.s32.totalorder %s20, 3
    %p142 = por %p140, %p141
    %p144 = scmp.ne.s32.totalorder %s127, %s143
    %p145 = scmp.eq.s32.totalorder %s20, 0
    %p146 = por %p144, %p145
    %s147 = ssub.s32 %s22, %s36
    %p148 = scmp.eq.s32.totalorder %s147, 0
    %s150 = sadd.s32 %s149, 1
    %s151 = scalar_select %p148, %s149, %s150
    %p154 = pneg %p148
    %p155 = scmp.eq.s32.totalorder %s14, 3
    %p156 = por %p154, %p155
    %p157 = scmp.ne.s32.totalorder %s149, %s152
    %p158 = scmp.eq.s32.totalorder %s14, 0
    %p159 = por %p157, %p158
    %p160 = scmp.ne.s32.totalorder %s149, %s152
    %p161 = scmp.eq.s32.totalorder %s19, 3
    %p162 = por %p160, %p161
    %p163 = scmp.ne.s32.totalorder %s152, %s153
    %p164 = scmp.eq.s32.totalorder %s19, 0
    %p165 = por %p163, %p164
    %p166 = scmp.ne.s32.totalorder %s152, %s153
    %p167 = scmp.eq.s32.totalorder %s20, 3
    %p168 = por %p166, %p167
    %p170 = scmp.ne.s32.totalorder %s153, %s169
    %p171 = scmp.eq.s32.totalorder %s20, 0
    %p172 = por %p170, %p171
    %s173 = ssub.s32 %s22, %s36
    %p174 = scmp.eq.s32.totalorder %s173, 0
    %s176 = sadd.s32 %s175, 1
    %s177 = scalar_select %p174, %s175, %s176
    %p180 = pneg %p174
    %p181 = scmp.eq.s32.totalorder %s14, 3
    %p182 = por %p180, %p181
    %p183 = scmp.ne.s32.totalorder %s175, %s178
    %p184 = scmp.eq.s32.totalorder %s14, 0
    %p185 = por %p183, %p184
    %p186 = scmp.ne.s32.totalorder %s175, %s178
    %p187 = scmp.eq.s32.totalorder %s19, 3
    %p188 = por %p186, %p187
    %p189 = scmp.ne.s32.totalorder %s178, %s179
    %p190 = scmp.eq.s32.totalorder %s19, 0
    %p191 = por %p189, %p190
    %p192 = scmp.ne.s32.totalorder %s178, %s179
    %p193 = scmp.eq.s32.totalorder %s20, 3
    %p194 = por %p192, %p193
    %p196 = scmp.ne.s32.totalorder %s179, %s195
    %p197 = scmp.eq.s32.totalorder %s20, 0
    %p198 = por %p196, %p197
    %s199 = ssub.s32 %s22, %s36
    %p200 = scmp.eq.s32.totalorder %s199, 0
    %s202 = sadd.s32 %s201, 1
    %s203 = scalar_select %p200, %s201, %s202
    %p206 = pneg %p200
    %p207 = scmp.eq.s32.totalorder %s14, 3
    %p208 = por %p206, %p207
    %p209 = scmp.ne.s32.totalorder %s201, %s204
    %p210 = scmp.eq.s32.totalorder %s14, 0
    %p211 = por %p209, %p210
    %p212 = scmp.ne.s32.totalorder %s201, %s204
    %p213 = scmp.eq.s32.totalorder %s19, 3
    %p214 = por %p212, %p213
    %p215 = scmp.ne.s32.totalorder %s204, %s205
    %p216 = scmp.eq.s32.totalorder %s19, 0
    %p217 = por %p215, %p216
    %p218 = scmp.ne.s32.totalorder %s204, %s205
    %p219 = scmp.eq.s32.totalorder %s20, 3
    %p220 = por %p218, %p219
    %p222 = scmp.ne.s32.totalorder %s205, %s221
    %p223 = scmp.eq.s32.totalorder %s20, 0
    %p224 = por %p222, %p223
    %s225 = ssub.s32 %s22, %s36
    %p226 = scmp.eq.s32.totalorder %s225, 0
    %s228 = sadd.s32 %s227, 1
    %s229 = scalar_select %p226, %s227, %s228
    %p232 = pneg %p226
    %p233 = scmp.eq.s32.totalorder %s14, 3
    %p234 = por %p232, %p233
    %p235 = scmp.ne.s32.totalorder %s227, %s230
    %p236 = scmp.eq.s32.totalorder %s14, 0
    %p237 = por %p235, %p236
    %p238 = scmp.ne.s32.totalorder %s227, %s230
    %p239 = scmp.eq.s32.totalorder %s19, 3
    %p240 = por %p238, %p239
    %p241 = scmp.ne.s32.totalorder %s230, %s231
    %p242 = scmp.eq.s32.totalorder %s19, 0
    %p243 = por %p241, %p242
    %p244 = scmp.ne.s32.totalorder %s230, %s231
    %p245 = scmp.eq.s32.totalorder %s20, 3
    %p246 = por %p244, %p245
    %p248 = scmp.ne.s32.totalorder %s231, %s247
    %p249 = scmp.eq.s32.totalorder %s20, 0
    %p250 = por %p248, %p249
    %s251 = ssub.s32 %s21, %s40
    %s252 = ssub.s32 %s22, %s36
    %s253 = sor.u32 %s251, %s252
    %s254 = ssub.s32 %s23, %s32
    %s255 = sor.u32 %s253, %s254
    %p256 = scmp.eq.s32.totalorder %s255, 0
    %s258 = sadd.s32 %s257, 1
    %s259 = scalar_select %p256, %s257, %s258
    %p262 = pneg %p256
    %p263 = scmp.eq.s32.totalorder %s14, 3
    %p264 = por %p262, %p263
    %p265 = scmp.ne.s32.totalorder %s257, %s260
    %p266 = scmp.eq.s32.totalorder %s14, 0
    %p267 = por %p265, %p266
    %p268 = scmp.ne.s32.totalorder %s257, %s260
    %p269 = scmp.eq.s32.totalorder %s19, 3
    %p270 = por %p268, %p269
    %p271 = scmp.ne.s32.totalorder %s260, %s261
    %p272 = scmp.eq.s32.totalorder %s19, 0
    %p273 = por %p271, %p272
    %p274 = scmp.ne.s32.totalorder %s260, %s261
    %p275 = scmp.eq.s32.totalorder %s20, 3
    %p276 = por %p274, %p275
    %p278 = scmp.ne.s32.totalorder %s261, %s277
    %p279 = scmp.eq.s32.totalorder %s20, 0
    %p280 = por %p278, %p279
    %p281 = scmp.le.s32.totalorder 1, %s14
    %p282 = scmp.lt.s32.totalorder %s14, 5
    %p283 = pnand %p281, %p282
    %p284 = pneg %p283
    // Predicated region
    $region9: #{tpu_custom_call.1} parent=5 // pred_check
      _
    $region10: #{tpu_custom_call.1} parent=5 // pred_check_branch
      %286 = sbr.rel (%p283) target = $region12
    $region11: #{tpu_custom_call.1} parent=5 // pred_region
      %s287 = ssub.s32 %s14, 1
    $region12: #{tpu_custom_call.1} parent=5 // pred_fallthru
      _
    %p288 = scmp.lt.s32.totalorder %s14, 4
    // Predicated region
    $region13: #{tpu_custom_call.1} parent=5 // pred_check
      %p289 = pneg %p288
    $region14: #{tpu_custom_call.1} parent=5 // pred_check_branch
      %291 = sbr.rel (%p289) target = $region16
    $region15: #{tpu_custom_call.1} parent=5 // pred_region
      // Predicated region
      $region17: #{tpu_custom_call.1} parent=15 // pred_check
        %p292 = pneg %p55
      $region18: #{tpu_custom_call.1} parent=15 // pred_check_branch
        %294 = sbr.rel (%p292) target = $region20
      $region19: #{tpu_custom_call.1} parent=15 // pred_region
        %s295 = smul.u32 32, %s23
        %p296 = scmp.lt.s32.totalorder %s21, 1
        %s297 = scalar_select %p296, %s21, 1
        %p298 = scmp.lt.s32.totalorder %s295, 31
        %s299 = scalar_select %p298, %s295, 31
        %s300 = smul.addr %s297, 32
        %s301 = sadd.s32 %s299, %s300
        %s302 = smul.addr %s301, 4
        %s303 = scalar_lea.vmem %s0, %s302
        %s304 = smul.u32 32, %s23
      $region20: #{tpu_custom_call.1} parent=15 // pred_fallthru
        _
      // Predicated region
      $region21: #{tpu_custom_call.1} parent=15 // pred_check
        %p305 = pneg %p81
      $region22: #{tpu_custom_call.1} parent=15 // pred_check_branch
        %307 = sbr.rel (%p305) target = $region24
      $region23: #{tpu_custom_call.1} parent=15 // pred_region
        %p308 = scmp.lt.s32.totalorder %s21, 1
        %s309 = scalar_select %p308, %s21, 1
        %s310 = smul.addr %s309, 32
        %s311 = smul.addr %s310, 4
        %s312 = scalar_lea.vmem %s1, %s311
      $region24: #{tpu_custom_call.1} parent=15 // pred_fallthru
        _
      // Predicated region
      $region25: #{tpu_custom_call.1} parent=15 // pred_check
        %p313 = pneg %p107
      $region26: #{tpu_custom_call.1} parent=15 // pred_check_branch
        %315 = sbr.rel (%p313) target = $region28
      $region27: #{tpu_custom_call.1} parent=15 // pred_region
        %p316 = scmp.lt.s32.totalorder %s22, 1
        %s317 = scalar_select %p316, %s22, 1
        %s318 = smul.addr %s317, 2
        %s319 = scalar_lea.vmem %s2, %s318
      $region28: #{tpu_custom_call.1} parent=15 // pred_fallthru
        _
      // Predicated region
      $region29: #{tpu_custom_call.1} parent=15 // pred_check
        %p320 = pneg %p133
      $region30: #{tpu_custom_call.1} parent=15 // pred_check_branch
        %322 = sbr.rel (%p320) target = $region32
      $region31: #{tpu_custom_call.1} parent=15 // pred_region
        %p323 = scmp.lt.s32.totalorder %s22, 1
        %s324 = scalar_select %p323, %s22, 1
        %s325 = smul.addr %s324, 2
        %s326 = scalar_lea.vmem %s3, %s325
      $region32: #{tpu_custom_call.1} parent=15 // pred_fallthru
        _
      // Predicated region
      $region33: #{tpu_custom_call.1} parent=15 // pred_check
        %p327 = pneg %p159
      $region34: #{tpu_custom_call.1} parent=15 // pred_check_branch
        %329 = sbr.rel (%p327) target = $region36
      $region35: #{tpu_custom_call.1} parent=15 // pred_region
        %p330 = scmp.lt.s32.totalorder %s22, 1
        %s331 = scalar_select %p330, %s22, 1
        %s332 = smul.addr %s331, 2
        %s333 = scalar_lea.vmem %s4, %s332
      $region36: #{tpu_custom_call.1} parent=15 // pred_fallthru
        _
      // Predicated region
      $region37: #{tpu_custom_call.1} parent=15 // pred_check
        %p334 = pneg %p185
      $region38: #{tpu_custom_call.1} parent=15 // pred_check_branch
        %336 = sbr.rel (%p334) target = $region40
      $region39: #{tpu_custom_call.1} parent=15 // pred_region
        %p337 = scmp.lt.s32.totalorder %s22, 1
        %s338 = scalar_select %p337, %s22, 1
        %s339 = scalar_lea.vmem %s5, %s338
      $region40: #{tpu_custom_call.1} parent=15 // pred_fallthru
        _
      // Predicated region
      $region41: #{tpu_custom_call.1} parent=15 // pred_check
        %p340 = pneg %p211
      $region42: #{tpu_custom_call.1} parent=15 // pred_check_branch
        %342 = sbr.rel (%p340) target = $region44
      $region43: #{tpu_custom_call.1} parent=15 // pred_region
        %p343 = scmp.lt.s32.totalorder %s22, 1
        %s344 = scalar_select %p343, %s22, 1
        %s345 = scalar_lea.vmem %s6, %s344
      $region44: #{tpu_custom_call.1} parent=15 // pred_fallthru
        _
      // Predicated region
      $region45: #{tpu_custom_call.1} parent=15 // pred_check
        %p346 = pneg %p237
      $region46: #{tpu_custom_call.1} parent=15 // pred_check_branch
        %348 = sbr.rel (%p346) target = $region48
      $region47: #{tpu_custom_call.1} parent=15 // pred_region
        %p349 = scmp.lt.s32.totalorder %s22, 1
        %s350 = scalar_select %p349, %s22, 1
        %s351 = scalar_lea.vmem %s7, %s350
      $region48: #{tpu_custom_call.1} parent=15 // pred_fallthru
        _
    $region16: #{tpu_custom_call.1} parent=5 // pred_fallthru
      _
    %p352 = scmp.le.s32.totalorder 1, %s14
    %p353 = scmp.lt.s32.totalorder %s14, 5
    %p354 = pnand %p352, %p353
    %p355 = pneg %p354
    // Predicated region
    $region49: #{tpu_custom_call.1} parent=5 // pred_check
      _
    $region50: #{tpu_custom_call.1} parent=5 // pred_check_branch
      %357 = sbr.rel (%p354) target = $region52
    $region51: #{tpu_custom_call.1} parent=5 // pred_region
      %s358 = ssub.s32 %s14, 1
      %s359 = smul.u32 32, %s26
      %p360 = scmp.lt.s32.totalorder %s24, 1
      %s361 = scalar_select %p360, %s24, 1
      %p362 = scmp.lt.s32.totalorder %s359, 31
      %s363 = scalar_select %p362, %s359, 31
      %s364 = smul.addr %s361, 32
      %s365 = sadd.s32 %s363, %s364
      %s366 = smul.addr %s365, 4
      %s367 = scalar_lea.vmem %s0, %s366
      %p368 = pneg %p61
      %p369 = pneg %p58
      %p370 = scmp.lt.s32.totalorder %s24, 1
      %s371 = scalar_select %p370, %s24, 1
      %s372 = smul.addr %s371, 32
      %s373 = smul.addr %s372, 4
      %s374 = scalar_lea.vmem %s1, %s373
      %p375 = pneg %p87
      %p376 = pneg %p84
      %p377 = scmp.lt.s32.totalorder %s25, 1
      %s378 = scalar_select %p377, %s25, 1
      %s379 = smul.addr %s378, 2
      %s380 = scalar_lea.vmem %s2, %s379
      %p381 = pneg %p113
      %p382 = pneg %p110
      %p383 = scmp.lt.s32.totalorder %s25, 1
      %s384 = scalar_select %p383, %s25, 1
      %s385 = smul.addr %s384, 2
      %s386 = scalar_lea.vmem %s3, %s385
      %p387 = pneg %p139
      %p388 = pneg %p136
      %p389 = scmp.lt.s32.totalorder %s25, 1
      %s390 = scalar_select %p389, %s25, 1
      %s391 = smul.addr %s390, 2
      %s392 = scalar_lea.vmem %s4, %s391
      %p393 = pneg %p165
      %p394 = pneg %p162
      %p395 = scmp.lt.s32.totalorder %s25, 1
      %s396 = scalar_select %p395, %s25, 1
      %s397 = scalar_lea.vmem %s5, %s396
      %p398 = pneg %p191
      %p399 = pneg %p188
      %p400 = scmp.lt.s32.totalorder %s25, 1
      %s401 = scalar_select %p400, %s25, 1
      %s402 = scalar_lea.vmem %s6, %s401
      %p403 = pneg %p217
      %p404 = pneg %p214
      %p405 = scmp.lt.s32.totalorder %s25, 1
      %s406 = scalar_select %p405, %s25, 1
      %s407 = scalar_lea.vmem %s7, %s406
      %p408 = pneg %p243
      %p409 = pneg %p240
      %p410 = pneg %p273
      %p411 = pneg %p270
      %s412 = smul.u32 32, %s26
      %p413 = scmp.lt.s32.totalorder %s24, 1
      %s414 = scalar_select %p413, %s24, 1
      %p415 = scmp.lt.s32.totalorder %s25, 1
      %s416 = scalar_select %p415, %s25, 1
      %p417 = scmp.lt.s32.totalorder %s412, 31
      %s418 = scalar_select %p417, %s412, 31
      %s419 = smul.addr %s416, 32
      %s420 = sadd.s32 %s418, %s419
      %s421 = smul.addr %s414, 64
      %s422 = sadd.s32 %s420, %s421
      %s423 = smul.addr %s422, 8
      %s424 = scalar_lea.vmem %s8, %s423
      %s425 = smul.u32 32, %s26
      %p426 = scmp.lt.s32.totalorder %s24, 1
      %s427 = scalar_select %p426, %s24, 1
      %p428 = scmp.lt.s32.totalorder %s425, 31
      %s429 = scalar_select %p428, %s425, 31
      %s430 = smul.addr %s427, 32
      %s431 = sadd.s32 %s429, %s430
      %s432 = smul.addr %s431, 4
      %s433 = scalar_lea.vmem %s0, %s432
      %s434 = smul.u32 32, %s26
      %p435 = scmp.lt.s32.totalorder %s24, 1
      %s436 = scalar_select %p435, %s24, 1
      %s437 = smul.addr %s436, 32
      %s438 = smul.addr %s437, 4
      %s439 = scalar_lea.vmem %s1, %s438
      %p440 = scmp.lt.s32.totalorder %s25, 1
      %s441 = scalar_select %p440, %s25, 1
      %s442 = smul.addr %s441, 2
      %s443 = scalar_lea.vmem %s2, %s442
      %p444 = scmp.lt.s32.totalorder %s25, 1
      %s445 = scalar_select %p444, %s25, 1
      %s446 = smul.addr %s445, 2
      %s447 = scalar_lea.vmem %s3, %s446
      %p448 = scmp.lt.s32.totalorder %s25, 1
      %s449 = scalar_select %p448, %s25, 1
      %s450 = smul.addr %s449, 2
      %s451 = scalar_lea.vmem %s4, %s450
      %p452 = scmp.lt.s32.totalorder %s25, 1
      %s453 = scalar_select %p452, %s25, 1
      %s454 = scalar_lea.vmem %s5, %s453
      %p455 = scmp.lt.s32.totalorder %s25, 1
      %s456 = scalar_select %p455, %s25, 1
      %s457 = scalar_lea.vmem %s6, %s456
      %p458 = scmp.lt.s32.totalorder %s25, 1
      %s459 = scalar_select %p458, %s25, 1
      %s460 = scalar_lea.vmem %s7, %s459
      %s461 = smul.u32 32, %s26
      %p462 = scmp.lt.s32.totalorder %s24, 1
      %s463 = scalar_select %p462, %s24, 1
      %p464 = scmp.lt.s32.totalorder %s25, 1
      %s465 = scalar_select %p464, %s25, 1
      %p466 = scmp.lt.s32.totalorder %s461, 31
      %s467 = scalar_select %p466, %s461, 31
      %s468 = smul.addr %s465, 32
      %s469 = sadd.s32 %s467, %s468
      %s470 = smul.addr %s463, 64
      %s471 = sadd.s32 %s469, %s470
      %s472 = smul.addr %s471, 8
      %s473 = scalar_lea.vmem %s8, %s472
      %s474 = smul.u32 32, %s26
      %v476 = vld [vmem:[%s433] sm:$0xf]
      %v477 = vld [vmem:[%s433 + $0x4] sm:$0xf]
      %v478 = vld [vmem:[%s433 + $0x8] sm:$0xf]
      %v479 = vld [vmem:[%s433 + $0xc] sm:$0xf]
      %v480 = vld [vmem:[%s433 + $0x10] sm:$0xf]
      %v481 = vld [vmem:[%s433 + $0x14] sm:$0xf]
      %v482 = vld [vmem:[%s433 + $0x18] sm:$0xf]
      %v483 = vld [vmem:[%s433 + $0x1c] sm:$0xf]
      %v484 = vld [vmem:[%s433 + $0x20] sm:$0xf]
      %v485 = vld [vmem:[%s433 + $0x24] sm:$0xf]
      %v486 = vld [vmem:[%s433 + $0x28] sm:$0xf]
      %v487 = vld [vmem:[%s433 + $0x2c] sm:$0xf]
      %v488 = vld [vmem:[%s433 + $0x30] sm:$0xf]
      %v489 = vld [vmem:[%s433 + $0x34] sm:$0xf]
      %v490 = vld [vmem:[%s433 + $0x38] sm:$0xf]
      %v491 = vld [vmem:[%s433 + $0x3c] sm:$0xf]
      %v492 = vld [vmem:[%s433 + $0x40] sm:$0xf]
      %v493 = vld [vmem:[%s433 + $0x44] sm:$0xf]
      %v494 = vld [vmem:[%s433 + $0x48] sm:$0xf]
      %v495 = vld [vmem:[%s433 + $0x4c] sm:$0xf]
      %v496 = vld [vmem:[%s433 + $0x50] sm:$0xf]
      %v497 = vld [vmem:[%s433 + $0x54] sm:$0xf]
      %v498 = vld [vmem:[%s433 + $0x58] sm:$0xf]
      %v499 = vld [vmem:[%s433 + $0x5c] sm:$0xf]
      %v500 = vld [vmem:[%s433 + $0x60] sm:$0xf]
      %v501 = vld [vmem:[%s433 + $0x64] sm:$0xf]
      %v502 = vld [vmem:[%s433 + $0x68] sm:$0xf]
      %v503 = vld [vmem:[%s433 + $0x6c] sm:$0xf]
      %v504 = vld [vmem:[%s433 + $0x70] sm:$0xf]
      %v505 = vld [vmem:[%s433 + $0x74] sm:$0xf]
      %v506 = vld [vmem:[%s433 + $0x78] sm:$0xf]
      %v507 = vld [vmem:[%s433 + $0x7c] sm:$0xf]
      %v508 = vld [vmem:[%s439] sm:$0xf]
      %v509 = vld [vmem:[%s439 + $0x4] sm:$0xf]
      %v510 = vld [vmem:[%s439 + $0x8] sm:$0xf]
      %v511 = vld [vmem:[%s439 + $0xc] sm:$0xf]
      %v512 = vld [vmem:[%s439 + $0x10] sm:$0xf]
      %v513 = vld [vmem:[%s439 + $0x14] sm:$0xf]
      %v514 = vld [vmem:[%s439 + $0x18] sm:$0xf]
      %v515 = vld [vmem:[%s439 + $0x1c] sm:$0xf]
      %v516 = vld [vmem:[%s439 + $0x20] sm:$0xf]
      %v517 = vld [vmem:[%s439 + $0x24] sm:$0xf]
      %v518 = vld [vmem:[%s439 + $0x28] sm:$0xf]
      %v519 = vld [vmem:[%s439 + $0x2c] sm:$0xf]
      %v520 = vld [vmem:[%s439 + $0x30] sm:$0xf]
      %v521 = vld [vmem:[%s439 + $0x34] sm:$0xf]
      %v522 = vld [vmem:[%s439 + $0x38] sm:$0xf]
      %v523 = vld [vmem:[%s439 + $0x3c] sm:$0xf]
      %v524 = vld [vmem:[%s439 + $0x40] sm:$0xf]
      %v525 = vld [vmem:[%s439 + $0x44] sm:$0xf]
      %v526 = vld [vmem:[%s439 + $0x48] sm:$0xf]
      %v527 = vld [vmem:[%s439 + $0x4c] sm:$0xf]
      %v528 = vld [vmem:[%s439 + $0x50] sm:$0xf]
      %v529 = vld [vmem:[%s439 + $0x54] sm:$0xf]
      %v530 = vld [vmem:[%s439 + $0x58] sm:$0xf]
      %v531 = vld [vmem:[%s439 + $0x5c] sm:$0xf]
      %v532 = vld [vmem:[%s439 + $0x60] sm:$0xf]
      %v533 = vld [vmem:[%s439 + $0x64] sm:$0xf]
      %v534 = vld [vmem:[%s439 + $0x68] sm:$0xf]
      %v535 = vld [vmem:[%s439 + $0x6c] sm:$0xf]
      %v536 = vld [vmem:[%s439 + $0x70] sm:$0xf]
      %v537 = vld [vmem:[%s439 + $0x74] sm:$0xf]
      %v538 = vld [vmem:[%s439 + $0x78] sm:$0xf]
      %v539 = vld [vmem:[%s439 + $0x7c] sm:$0xf]
      %v540 = vld [vmem:[%s443] sm:$0x3]
      %v541 = vld [vmem:[%s454] sm:$0x1]
      %v543 = vlaneseq
      %v544 = vshrl.u32 %v543, 7
      %v545 = vsub.s32 0, %v544
      %v546 = vrot.slane %v541, %v545
      %v580 = vunpack.c.l.b16 %v476
      %v581 = vunpack.c.l.b16 %v477
      %v582 = vunpack.c.l.b16 %v478
      %v583 = vunpack.c.l.b16 %v479
      %v584 = vunpack.c.l.b16 %v480
      %v585 = vunpack.c.l.b16 %v481
      %v586 = vunpack.c.l.b16 %v482
      %v587 = vunpack.c.l.b16 %v483
      %v588 = vunpack.c.l.b16 %v484
      %v589 = vunpack.c.l.b16 %v485
      %v590 = vunpack.c.l.b16 %v486
      %v591 = vunpack.c.l.b16 %v487
      %v592 = vunpack.c.l.b16 %v488
      %v593 = vunpack.c.l.b16 %v489
      %v594 = vunpack.c.l.b16 %v490
      %v595 = vunpack.c.l.b16 %v491
      %v596 = vunpack.c.l.b16 %v492
      %v597 = vunpack.c.l.b16 %v493
      %v598 = vunpack.c.l.b16 %v494
      %v599 = vunpack.c.l.b16 %v495
      %v600 = vunpack.c.l.b16 %v496
      %v601 = vunpack.c.l.b16 %v497
      %v602 = vunpack.c.l.b16 %v498
      %v603 = vunpack.c.l.b16 %v499
      %v604 = vunpack.c.l.b16 %v500
      %v605 = vunpack.c.l.b16 %v501
      %v606 = vunpack.c.l.b16 %v502
      %v607 = vunpack.c.l.b16 %v503
      %v608 = vunpack.c.l.b16 %v504
      %v609 = vunpack.c.l.b16 %v505
      %v610 = vunpack.c.l.b16 %v506
      %v611 = vunpack.c.l.b16 %v507
      %v612 = vpack.c.b16 %v581, %v580
      %v613 = vpack.c.b16 %v583, %v582
      %v614 = vpack.c.b16 %v585, %v584
      %v615 = vpack.c.b16 %v587, %v586
      %v616 = vpack.c.b16 %v589, %v588
      %v617 = vpack.c.b16 %v591, %v590
      %v618 = vpack.c.b16 %v593, %v592
      %v619 = vpack.c.b16 %v595, %v594
      %v620 = vpack.c.b16 %v597, %v596
      %v621 = vpack.c.b16 %v599, %v598
      %v622 = vpack.c.b16 %v601, %v600
      %v623 = vpack.c.b16 %v603, %v602
      %v624 = vpack.c.b16 %v605, %v604
      %v625 = vpack.c.b16 %v607, %v606
      %v626 = vpack.c.b16 %v609, %v608
      %v627 = vpack.c.b16 %v611, %v610
      %vm628 = vcmask 31744
      %v630 = vsel %vm628, %v612, 0
      %v633 = vsel %vm628, %v613, 0
      %v636 = vsel %vm628, %v614, 0
      %v639 = vsel %vm628, %v615, 0
      %v642 = vsel %vm628, %v616, 0
      %v645 = vsel %vm628, %v617, 0
      %v648 = vsel %vm628, %v618, 0
      %v651 = vsel %vm628, %v619, 0
      %v654 = vsel %vm628, %v620, 0
      %v657 = vsel %vm628, %v621, 0
      %v660 = vsel %vm628, %v622, 0
      %v663 = vsel %vm628, %v623, 0
      %v666 = vsel %vm628, %v624, 0
      %v669 = vsel %vm628, %v625, 0
      %v672 = vsel %vm628, %v626, 0
      %v675 = vsel %vm628, %v627, 0
      %vm677 = vcmask 1041408
      %v679 = vsel %vm677, %v540, 0
      %681 = vmatprep.subr.bf16.mxu0 0
      %682 = vmatpush1.bf16.msra.mxu0 0
      %683 = vmatprep.subr.bf16.mxu0 0
      %684 = vmatpush1.bf16.msra.mxu0 0
      %685 = vmatprep.subr.bf16.mxu0 0
      %686 = vmatpush1.bf16.msra.mxu0 0
      %687 = vmatprep.subr.bf16.mxu0 0
      %688 = vmatpush1.bf16.msra.mxu0 0
      %689 = vmatprep.subr.bf16.mxu0 0
      %690 = vmatpush1.bf16.msra.mxu0 0
      %691 = vmatprep.subr.bf16.mxu0 0
      %692 = vmatpush1.bf16.msra.mxu0 0
      %693 = vmatprep.subr.bf16.mxu0 0
      %694 = vmatpush1.bf16.msra.mxu0 0
      %695 = vmatprep.subr.bf16.mxu0 0
      %696 = vmatpush1.bf16.msra.mxu0 %v679
      %697 = vmatprep.subr.bf16.mxu0 0
      %698 = vmatpush2.bf16.msra.mxu0 0
      %699 = vmatprep.subr.bf16.mxu0 0
      %700 = vmatpush2.bf16.msra.mxu0 0
      %701 = vmatprep.subr.bf16.mxu0 0
      %702 = vmatpush2.bf16.msra.mxu0 0
      %703 = vmatprep.subr.bf16.mxu0 0
      %704 = vmatpush2.bf16.msra.mxu0 0
      %705 = vmatprep.subr.bf16.mxu0 0
      %706 = vmatpush2.bf16.msra.mxu0 0
      %707 = vmatprep.subr.bf16.mxu0 0
      %708 = vmatpush2.bf16.msra.mxu0 0
      %709 = vmatprep.subr.bf16.mxu0 0
      %710 = vmatpush2.bf16.msra.mxu0 0
      %711 = vmatprep.subr.bf16.mxu0 0
      %712 = vmatpush2.bf16.msra.mxu0 0
      %713 = vmatprep.mubr.bf16.mxu0 0
      %714 = vmatmul.mubr.bf16.gmra.mxu0 %v630
      %v715 = vpop.f32.mrf.mxu0
      %v716 = vadd.f32 %v546, %v715
      %v717 = vpop.f32.mrf.mxu0
      %v718 = vpop.f32.mrf.mxu0
      %v719 = vadd.f32 %v546, %v718
      %v720 = vpop.f32.mrf.mxu0
      %721 = vmatprep.mubr.bf16.mxu0 0
      %722 = vmatmul.mubr.bf16.gmra.mxu0 %v633
      %v723 = vpop.f32.mrf.mxu0
      %v724 = vadd.f32 %v546, %v723
      %v725 = vpop.f32.mrf.mxu0
      %v726 = vpop.f32.mrf.mxu0
      %v727 = vadd.f32 %v546, %v726
      %v728 = vpop.f32.mrf.mxu0
      %729 = vmatprep.mubr.bf16.mxu0 0
      %730 = vmatmul.mubr.bf16.gmra.mxu0 %v636
      %v731 = vpop.f32.mrf.mxu0
      %v732 = vadd.f32 %v546, %v731
      %v733 = vpop.f32.mrf.mxu0
      %v734 = vpop.f32.mrf.mxu0
      %v735 = vadd.f32 %v546, %v734
      %v736 = vpop.f32.mrf.mxu0
      %737 = vmatprep.mubr.bf16.mxu0 0
      %738 = vmatmul.mubr.bf16.gmra.mxu0 %v639
      %v739 = vpop.f32.mrf.mxu0
      %v740 = vadd.f32 %v546, %v739
      %v741 = vpop.f32.mrf.mxu0
      %v742 = vpop.f32.mrf.mxu0
      %v743 = vadd.f32 %v546, %v742
      %v744 = vpop.f32.mrf.mxu0
      %745 = vmatprep.mubr.bf16.mxu0 0
      %746 = vmatmul.mubr.bf16.gmra.mxu0 %v642
      %v747 = vpop.f32.mrf.mxu0
      %v748 = vadd.f32 %v546, %v747
      %v749 = vpop.f32.mrf.mxu0
      %v750 = vpop.f32.mrf.mxu0
      %v751 = vadd.f32 %v546, %v750
      %v752 = vpop.f32.mrf.mxu0
      %753 = vmatprep.mubr.bf16.mxu0 0
      %754 = vmatmul.mubr.bf16.gmra.mxu0 %v645
      %v755 = vpop.f32.mrf.mxu0
      %v756 = vadd.f32 %v546, %v755
      %v757 = vpop.f32.mrf.mxu0
      %v758 = vpop.f32.mrf.mxu0
      %v759 = vadd.f32 %v546, %v758
      %v760 = vpop.f32.mrf.mxu0
      %761 = vmatprep.mubr.bf16.mxu0 0
      %762 = vmatmul.mubr.bf16.gmra.mxu0 %v648
      %v763 = vpop.f32.mrf.mxu0
      %v764 = vadd.f32 %v546, %v763
      %v765 = vpop.f32.mrf.mxu0
      %v766 = vpop.f32.mrf.mxu0
      %v767 = vadd.f32 %v546, %v766
      %v768 = vpop.f32.mrf.mxu0
      %769 = vmatprep.mubr.bf16.mxu0 0
      %770 = vmatmul.mubr.bf16.gmra.mxu0 %v651
      %v771 = vpop.f32.mrf.mxu0
      %v772 = vadd.f32 %v546, %v771
      %v773 = vpop.f32.mrf.mxu0
      %v774 = vpop.f32.mrf.mxu0
      %v775 = vadd.f32 %v546, %v774
      %v776 = vpop.f32.mrf.mxu0
      %777 = vmatprep.mubr.bf16.mxu0 0
      %778 = vmatmul.mubr.bf16.gmra.mxu0 %v654
      %v779 = vpop.f32.mrf.mxu0
      %v780 = vadd.f32 %v546, %v779
      %v781 = vpop.f32.mrf.mxu0
      %v782 = vpop.f32.mrf.mxu0
      %v783 = vadd.f32 %v546, %v782
      %v784 = vpop.f32.mrf.mxu0
      %785 = vmatprep.mubr.bf16.mxu0 0
      %786 = vmatmul.mubr.bf16.gmra.mxu0 %v657
      %v787 = vpop.f32.mrf.mxu0
      %v788 = vadd.f32 %v546, %v787
      %v789 = vpop.f32.mrf.mxu0
      %v790 = vpop.f32.mrf.mxu0
      %v791 = vadd.f32 %v546, %v790
      %v792 = vpop.f32.mrf.mxu0
      %793 = vmatprep.mubr.bf16.mxu0 0
      %794 = vmatmul.mubr.bf16.gmra.mxu0 %v660
      %v795 = vpop.f32.mrf.mxu0
      %v796 = vadd.f32 %v546, %v795
      %v797 = vpop.f32.mrf.mxu0
      %v798 = vpop.f32.mrf.mxu0
      %v799 = vadd.f32 %v546, %v798
      %v800 = vpop.f32.mrf.mxu0
      %801 = vmatprep.mubr.bf16.mxu0 0
      %802 = vmatmul.mubr.bf16.gmra.mxu0 %v663
      %v803 = vpop.f32.mrf.mxu0
      %v804 = vadd.f32 %v546, %v803
      %v805 = vpop.f32.mrf.mxu0
      %v806 = vpop.f32.mrf.mxu0
      %v807 = vadd.f32 %v546, %v806
      %v808 = vpop.f32.mrf.mxu0
      %809 = vmatprep.mubr.bf16.mxu0 0
      %810 = vmatmul.mubr.bf16.gmra.mxu0 %v666
      %v811 = vpop.f32.mrf.mxu0
      %v812 = vadd.f32 %v546, %v811
      %v813 = vpop.f32.mrf.mxu0
      %v814 = vpop.f32.mrf.mxu0
      %v815 = vadd.f32 %v546, %v814
      %v816 = vpop.f32.mrf.mxu0
      %817 = vmatprep.mubr.bf16.mxu0 0
      %818 = vmatmul.mubr.bf16.gmra.mxu0 %v669
      %v819 = vpop.f32.mrf.mxu0
      %v820 = vadd.f32 %v546, %v819
      %v821 = vpop.f32.mrf.mxu0
      %v822 = vpop.f32.mrf.mxu0
      %v823 = vadd.f32 %v546, %v822
      %v824 = vpop.f32.mrf.mxu0
      %825 = vmatprep.mubr.bf16.mxu0 0
      %826 = vmatmul.mubr.bf16.gmra.mxu0 %v672
      %v827 = vpop.f32.mrf.mxu0
      %v828 = vadd.f32 %v546, %v827
      %v829 = vpop.f32.mrf.mxu0
      %v830 = vpop.f32.mrf.mxu0
      %v831 = vadd.f32 %v546, %v830
      %v832 = vpop.f32.mrf.mxu0
      %833 = vmatprep.mubr.bf16.mxu0 0
      %834 = vmatmul.mubr.bf16.gmra.mxu0 %v675
      %v835 = vpop.f32.mrf.mxu0
      %v836 = vadd.f32 %v546, %v835
      %v837 = vpop.f32.mrf.mxu0
      %v838 = vpop.f32.mrf.mxu0
      %v839 = vadd.f32 %v546, %v838
      %v840 = vpop.f32.mrf.mxu0
      %841 = vdwg.mxu0
      %v842 = vpack.c.bf16 %v719, %v716
      %v843 = vpack.c.bf16 %v727, %v724
      %v844 = vpack.c.bf16 %v735, %v732
      %v845 = vpack.c.bf16 %v743, %v740
      %v846 = vpack.c.bf16 %v751, %v748
      %v847 = vpack.c.bf16 %v759, %v756
      %v848 = vpack.c.bf16 %v767, %v764
      %v849 = vpack.c.bf16 %v775, %v772
      %v850 = vpack.c.bf16 %v783, %v780
      %v851 = vpack.c.bf16 %v791, %v788
      %v852 = vpack.c.bf16 %v799, %v796
      %v853 = vpack.c.bf16 %v807, %v804
      %v854 = vpack.c.bf16 %v815, %v812
      %v855 = vpack.c.bf16 %v823, %v820
      %v856 = vpack.c.bf16 %v831, %v828
      %v857 = vpack.c.bf16 %v839, %v836
      %v858 = vld [vmem:[%s447] sm:$0x3]
      %v859 = vld [vmem:[%s457] sm:$0x1]
      %v861 = vlaneseq
      %v862 = vshrl.u32 %v861, 7
      %v863 = vsub.s32 0, %v862
      %v864 = vrot.slane %v859, %v863
      %v898 = vunpack.c.l.b16 %v508
      %v899 = vunpack.c.l.b16 %v509
      %v900 = vunpack.c.l.b16 %v510
      %v901 = vunpack.c.l.b16 %v511
      %v902 = vunpack.c.l.b16 %v512
      %v903 = vunpack.c.l.b16 %v513
      %v904 = vunpack.c.l.b16 %v514
      %v905 = vunpack.c.l.b16 %v515
      %v906 = vunpack.c.l.b16 %v516
      %v907 = vunpack.c.l.b16 %v517
      %v908 = vunpack.c.l.b16 %v518
      %v909 = vunpack.c.l.b16 %v519
      %v910 = vunpack.c.l.b16 %v520
      %v911 = vunpack.c.l.b16 %v521
      %v912 = vunpack.c.l.b16 %v522
      %v913 = vunpack.c.l.b16 %v523
      %v914 = vunpack.c.l.b16 %v524
      %v915 = vunpack.c.l.b16 %v525
      %v916 = vunpack.c.l.b16 %v526
      %v917 = vunpack.c.l.b16 %v527
      %v918 = vunpack.c.l.b16 %v528
      %v919 = vunpack.c.l.b16 %v529
      %v920 = vunpack.c.l.b16 %v530
      %v921 = vunpack.c.l.b16 %v531
      %v922 = vunpack.c.l.b16 %v532
      %v923 = vunpack.c.l.b16 %v533
      %v924 = vunpack.c.l.b16 %v534
      %v925 = vunpack.c.l.b16 %v535
      %v926 = vunpack.c.l.b16 %v536
      %v927 = vunpack.c.l.b16 %v537
      %v928 = vunpack.c.l.b16 %v538
      %v929 = vunpack.c.l.b16 %v539
      %v930 = vpack.c.b16 %v899, %v898
      %v931 = vpack.c.b16 %v901, %v900
      %v932 = vpack.c.b16 %v903, %v902
      %v933 = vpack.c.b16 %v905, %v904
      %v934 = vpack.c.b16 %v907, %v906
      %v935 = vpack.c.b16 %v909, %v908
      %v936 = vpack.c.b16 %v911, %v910
      %v937 = vpack.c.b16 %v913, %v912
      %v938 = vpack.c.b16 %v915, %v914
      %v939 = vpack.c.b16 %v917, %v916
      %v940 = vpack.c.b16 %v919, %v918
      %v941 = vpack.c.b16 %v921, %v920
      %v942 = vpack.c.b16 %v923, %v922
      %v943 = vpack.c.b16 %v925, %v924
      %v944 = vpack.c.b16 %v927, %v926
      %v945 = vpack.c.b16 %v929, %v928
      %v947 = vsel %vm628, %v930, 0
      %v950 = vsel %vm628, %v931, 0
      %v953 = vsel %vm628, %v932, 0
      %v956 = vsel %vm628, %v933, 0
      %v959 = vsel %vm628, %v934, 0
      %v962 = vsel %vm628, %v935, 0
      %v965 = vsel %vm628, %v936, 0
      %v968 = vsel %vm628, %v937, 0
      %v971 = vsel %vm628, %v938, 0
      %v974 = vsel %vm628, %v939, 0
      %v977 = vsel %vm628, %v940, 0
      %v980 = vsel %vm628, %v941, 0
      %v983 = vsel %vm628, %v942, 0
      %v986 = vsel %vm628, %v943, 0
      %v989 = vsel %vm628, %v944, 0
      %v992 = vsel %vm628, %v945, 0
      %v995 = vsel %vm677, %v858, 0
      %997 = vmatprep.subr.bf16.mxu0 0
      %998 = vmatpush1.bf16.msra.mxu0 0
      %999 = vmatprep.subr.bf16.mxu0 0
      %1000 = vmatpush1.bf16.msra.mxu0 0
      %1001 = vmatprep.subr.bf16.mxu0 0
      %1002 = vmatpush1.bf16.msra.mxu0 0
      %1003 = vmatprep.subr.bf16.mxu0 0
      %1004 = vmatpush1.bf16.msra.mxu0 0
      %1005 = vmatprep.subr.bf16.mxu0 0
      %1006 = vmatpush1.bf16.msra.mxu0 0
      %1007 = vmatprep.subr.bf16.mxu0 0
      %1008 = vmatpush1.bf16.msra.mxu0 0
      %1009 = vmatprep.subr.bf16.mxu0 0
      %1010 = vmatpush1.bf16.msra.mxu0 0
      %1011 = vmatprep.subr.bf16.mxu0 0
      %1012 = vmatpush1.bf16.msra.mxu0 %v995
      %1013 = vmatprep.subr.bf16.mxu0 0
      %1014 = vmatpush2.bf16.msra.mxu0 0
      %1015 = vmatprep.subr.bf16.mxu0 0
      %1016 = vmatpush2.bf16.msra.mxu0 0
      %1017 = vmatprep.subr.bf16.mxu0 0
      %1018 = vmatpush2.bf16.msra.mxu0 0
      %1019 = vmatprep.subr.bf16.mxu0 0
      %1020 = vmatpush2.bf16.msra.mxu0 0
      %1021 = vmatprep.subr.bf16.mxu0 0
      %1022 = vmatpush2.bf16.msra.mxu0 0
      %1023 = vmatprep.subr.bf16.mxu0 0
      %1024 = vmatpush2.bf16.msra.mxu0 0
      %1025 = vmatprep.subr.bf16.mxu0 0
      %1026 = vmatpush2.bf16.msra.mxu0 0
      %1027 = vmatprep.subr.bf16.mxu0 0
      %1028 = vmatpush2.bf16.msra.mxu0 0
      %1029 = vmatprep.mubr.bf16.mxu0 0
      %1030 = vmatmul.mubr.bf16.gmra.mxu0 %v947
      %v1031 = vpop.f32.mrf.mxu0
      %v1032 = vadd.f32 %v864, %v1031
      %v1033 = vpop.f32.mrf.mxu0
      %v1034 = vpop.f32.mrf.mxu0
      %v1035 = vadd.f32 %v864, %v1034
      %v1036 = vpop.f32.mrf.mxu0
      %1037 = vmatprep.mubr.bf16.mxu0 0
      %1038 = vmatmul.mubr.bf16.gmra.mxu0 %v950
      %v1039 = vpop.f32.mrf.mxu0
      %v1040 = vadd.f32 %v864, %v1039
      %v1041 = vpop.f32.mrf.mxu0
      %v1042 = vpop.f32.mrf.mxu0
      %v1043 = vadd.f32 %v864, %v1042
      %v1044 = vpop.f32.mrf.mxu0
      %1045 = vmatprep.mubr.bf16.mxu0 0
      %1046 = vmatmul.mubr.bf16.gmra.mxu0 %v953
      %v1047 = vpop.f32.mrf.mxu0
      %v1048 = vadd.f32 %v864, %v1047
      %v1049 = vpop.f32.mrf.mxu0
      %v1050 = vpop.f32.mrf.mxu0
      %v1051 = vadd.f32 %v864, %v1050
      %v1052 = vpop.f32.mrf.mxu0
      %1053 = vmatprep.mubr.bf16.mxu0 0
      %1054 = vmatmul.mubr.bf16.gmra.mxu0 %v956
      %v1055 = vpop.f32.mrf.mxu0
      %v1056 = vadd.f32 %v864, %v1055
      %v1057 = vpop.f32.mrf.mxu0
      %v1058 = vpop.f32.mrf.mxu0
      %v1059 = vadd.f32 %v864, %v1058
      %v1060 = vpop.f32.mrf.mxu0
      %1061 = vmatprep.mubr.bf16.mxu0 0
      %1062 = vmatmul.mubr.bf16.gmra.mxu0 %v959
      %v1063 = vpop.f32.mrf.mxu0
      %v1064 = vadd.f32 %v864, %v1063
      %v1065 = vpop.f32.mrf.mxu0
      %v1066 = vpop.f32.mrf.mxu0
      %v1067 = vadd.f32 %v864, %v1066
      %v1068 = vpop.f32.mrf.mxu0
      %1069 = vmatprep.mubr.bf16.mxu0 0
      %1070 = vmatmul.mubr.bf16.gmra.mxu0 %v962
      %v1071 = vpop.f32.mrf.mxu0
      %v1072 = vadd.f32 %v864, %v1071
      %v1073 = vpop.f32.mrf.mxu0
      %v1074 = vpop.f32.mrf.mxu0
      %v1075 = vadd.f32 %v864, %v1074
      %v1076 = vpop.f32.mrf.mxu0
      %1077 = vmatprep.mubr.bf16.mxu0 0
      %1078 = vmatmul.mubr.bf16.gmra.mxu0 %v965
      %v1079 = vpop.f32.mrf.mxu0
      %v1080 = vadd.f32 %v864, %v1079
      %v1081 = vpop.f32.mrf.mxu0
      %v1082 = vpop.f32.mrf.mxu0
      %v1083 = vadd.f32 %v864, %v1082
      %v1084 = vpop.f32.mrf.mxu0
      %1085 = vmatprep.mubr.bf16.mxu0 0
      %1086 = vmatmul.mubr.bf16.gmra.mxu0 %v968
      %v1087 = vpop.f32.mrf.mxu0
      %v1088 = vadd.f32 %v864, %v1087
      %v1089 = vpop.f32.mrf.mxu0
      %v1090 = vpop.f32.mrf.mxu0
      %v1091 = vadd.f32 %v864, %v1090
      %v1092 = vpop.f32.mrf.mxu0
      %1093 = vmatprep.mubr.bf16.mxu0 0
      %1094 = vmatmul.mubr.bf16.gmra.mxu0 %v971
      %v1095 = vpop.f32.mrf.mxu0
      %v1096 = vadd.f32 %v864, %v1095
      %v1097 = vpop.f32.mrf.mxu0
      %v1098 = vpop.f32.mrf.mxu0
      %v1099 = vadd.f32 %v864, %v1098
      %v1100 = vpop.f32.mrf.mxu0
      %1101 = vmatprep.mubr.bf16.mxu0 0
      %1102 = vmatmul.mubr.bf16.gmra.mxu0 %v974
      %v1103 = vpop.f32.mrf.mxu0
      %v1104 = vadd.f32 %v864, %v1103
      %v1105 = vpop.f32.mrf.mxu0
      %v1106 = vpop.f32.mrf.mxu0
      %v1107 = vadd.f32 %v864, %v1106
      %v1108 = vpop.f32.mrf.mxu0
      %1109 = vmatprep.mubr.bf16.mxu0 0
      %1110 = vmatmul.mubr.bf16.gmra.mxu0 %v977
      %v1111 = vpop.f32.mrf.mxu0
      %v1112 = vadd.f32 %v864, %v1111
      %v1113 = vpop.f32.mrf.mxu0
      %v1114 = vpop.f32.mrf.mxu0
      %v1115 = vadd.f32 %v864, %v1114
      %v1116 = vpop.f32.mrf.mxu0
      %1117 = vmatprep.mubr.bf16.mxu0 0
      %1118 = vmatmul.mubr.bf16.gmra.mxu0 %v980
      %v1119 = vpop.f32.mrf.mxu0
      %v1120 = vadd.f32 %v864, %v1119
      %v1121 = vpop.f32.mrf.mxu0
      %v1122 = vpop.f32.mrf.mxu0
      %v1123 = vadd.f32 %v864, %v1122
      %v1124 = vpop.f32.mrf.mxu0
      %1125 = vmatprep.mubr.bf16.mxu0 0
      %1126 = vmatmul.mubr.bf16.gmra.mxu0 %v983
      %v1127 = vpop.f32.mrf.mxu0
      %v1128 = vadd.f32 %v864, %v1127
      %v1129 = vpop.f32.mrf.mxu0
      %v1130 = vpop.f32.mrf.mxu0
      %v1131 = vadd.f32 %v864, %v1130
      %v1132 = vpop.f32.mrf.mxu0
      %1133 = vmatprep.mubr.bf16.mxu0 0
      %1134 = vmatmul.mubr.bf16.gmra.mxu0 %v986
      %v1135 = vpop.f32.mrf.mxu0
      %v1136 = vadd.f32 %v864, %v1135
      %v1137 = vpop.f32.mrf.mxu0
      %v1138 = vpop.f32.mrf.mxu0
      %v1139 = vadd.f32 %v864, %v1138
      %v1140 = vpop.f32.mrf.mxu0
      %1141 = vmatprep.mubr.bf16.mxu0 0
      %1142 = vmatmul.mubr.bf16.gmra.mxu0 %v989
      %v1143 = vpop.f32.mrf.mxu0
      %v1144 = vadd.f32 %v864, %v1143
      %v1145 = vpop.f32.mrf.mxu0
      %v1146 = vpop.f32.mrf.mxu0
      %v1147 = vadd.f32 %v864, %v1146
      %v1148 = vpop.f32.mrf.mxu0
      %1149 = vmatprep.mubr.bf16.mxu0 0
      %1150 = vmatmul.mubr.bf16.gmra.mxu0 %v992
      %v1151 = vpop.f32.mrf.mxu0
      %v1152 = vadd.f32 %v864, %v1151
      %v1153 = vpop.f32.mrf.mxu0
      %v1154 = vpop.f32.mrf.mxu0
      %v1155 = vadd.f32 %v864, %v1154
      %v1156 = vpop.f32.mrf.mxu0
      %1157 = vdwg.mxu0
      %v1158 = vpack.c.bf16 %v1035, %v1032
      %v1159 = vpack.c.bf16 %v1043, %v1040
      %v1160 = vpack.c.bf16 %v1051, %v1048
      %v1161 = vpack.c.bf16 %v1059, %v1056
      %v1162 = vpack.c.bf16 %v1067, %v1064
      %v1163 = vpack.c.bf16 %v1075, %v1072
      %v1164 = vpack.c.bf16 %v1083, %v1080
      %v1165 = vpack.c.bf16 %v1091, %v1088
      %v1166 = vpack.c.bf16 %v1099, %v1096
      %v1167 = vpack.c.bf16 %v1107, %v1104
      %v1168 = vpack.c.bf16 %v1115, %v1112
      %v1169 = vpack.c.bf16 %v1123, %v1120
      %v1170 = vpack.c.bf16 %v1131, %v1128
      %v1171 = vpack.c.bf16 %v1139, %v1136
      %v1172 = vpack.c.bf16 %v1147, %v1144
      %v1173 = vpack.c.bf16 %v1155, %v1152
      %v1174 = vld [vmem:[%s451] sm:$0x3]
      %v1175 = vld [vmem:[%s460] sm:$0x1]
      %v1177 = vlaneseq
      %v1178 = vshrl.u32 %v1177, 7
      %v1179 = vsub.s32 0, %v1178
      %v1180 = vrot.slane %v1175, %v1179
      %v1183 = vsel %vm677, %v1174, 0
      %1185 = vmatprep.subr.bf16.mxu0 0
      %1186 = vmatpush1.bf16.msra.mxu0 0
      %1187 = vmatprep.subr.bf16.mxu0 0
      %1188 = vmatpush1.bf16.msra.mxu0 0
      %1189 = vmatprep.subr.bf16.mxu0 0
      %1190 = vmatpush1.bf16.msra.mxu0 0
      %1191 = vmatprep.subr.bf16.mxu0 0
      %1192 = vmatpush1.bf16.msra.mxu0 0
      %1193 = vmatprep.subr.bf16.mxu0 0
      %1194 = vmatpush1.bf16.msra.mxu0 0
      %1195 = vmatprep.subr.bf16.mxu0 0
      %1196 = vmatpush1.bf16.msra.mxu0 0
      %1197 = vmatprep.subr.bf16.mxu0 0
      %1198 = vmatpush1.bf16.msra.mxu0 0
      %1199 = vmatprep.subr.bf16.mxu0 0
      %1200 = vmatpush1.bf16.msra.mxu0 %v1183
      %1201 = vmatprep.subr.bf16.mxu0 0
      %1202 = vmatpush2.bf16.msra.mxu0 0
      %1203 = vmatprep.subr.bf16.mxu0 0
      %1204 = vmatpush2.bf16.msra.mxu0 0
      %1205 = vmatprep.subr.bf16.mxu0 0
      %1206 = vmatpush2.bf16.msra.mxu0 0
      %1207 = vmatprep.subr.bf16.mxu0 0
      %1208 = vmatpush2.bf16.msra.mxu0 0
      %1209 = vmatprep.subr.bf16.mxu0 0
      %1210 = vmatpush2.bf16.msra.mxu0 0
      %1211 = vmatprep.subr.bf16.mxu0 0
      %1212 = vmatpush2.bf16.msra.mxu0 0
      %1213 = vmatprep.subr.bf16.mxu0 0
      %1214 = vmatpush2.bf16.msra.mxu0 0
      %1215 = vmatprep.subr.bf16.mxu0 0
      %1216 = vmatpush2.bf16.msra.mxu0 0
      %1217 = vmatprep.mubr.bf16.mxu0 0
      %1218 = vmatmul.mubr.bf16.gmra.mxu0 %v947
      %v1219 = vpop.f32.mrf.mxu0
      %v1220 = vadd.f32 %v1180, %v1219
      %v1221 = vpop.f32.mrf.mxu0
      %v1222 = vpop.f32.mrf.mxu0
      %v1223 = vadd.f32 %v1180, %v1222
      %v1224 = vpop.f32.mrf.mxu0
      %1225 = vmatprep.mubr.bf16.mxu0 0
      %1226 = vmatmul.mubr.bf16.gmra.mxu0 %v950
      %v1227 = vpop.f32.mrf.mxu0
      %v1228 = vadd.f32 %v1180, %v1227
      %v1229 = vpop.f32.mrf.mxu0
      %v1230 = vpop.f32.mrf.mxu0
      %v1231 = vadd.f32 %v1180, %v1230
      %v1232 = vpop.f32.mrf.mxu0
      %1233 = vmatprep.mubr.bf16.mxu0 0
      %1234 = vmatmul.mubr.bf16.gmra.mxu0 %v953
      %v1235 = vpop.f32.mrf.mxu0
      %v1236 = vadd.f32 %v1180, %v1235
      %v1237 = vpop.f32.mrf.mxu0
      %v1238 = vpop.f32.mrf.mxu0
      %v1239 = vadd.f32 %v1180, %v1238
      %v1240 = vpop.f32.mrf.mxu0
      %1241 = vmatprep.mubr.bf16.mxu0 0
      %1242 = vmatmul.mubr.bf16.gmra.mxu0 %v956
      %v1243 = vpop.f32.mrf.mxu0
      %v1244 = vadd.f32 %v1180, %v1243
      %v1245 = vpop.f32.mrf.mxu0
      %v1246 = vpop.f32.mrf.mxu0
      %v1247 = vadd.f32 %v1180, %v1246
      %v1248 = vpop.f32.mrf.mxu0
      %1249 = vmatprep.mubr.bf16.mxu0 0
      %1250 = vmatmul.mubr.bf16.gmra.mxu0 %v959
      %v1251 = vpop.f32.mrf.mxu0
      %v1252 = vadd.f32 %v1180, %v1251
      %v1253 = vpop.f32.mrf.mxu0
      %v1254 = vpop.f32.mrf.mxu0
      %v1255 = vadd.f32 %v1180, %v1254
      %v1256 = vpop.f32.mrf.mxu0
      %1257 = vmatprep.mubr.bf16.mxu0 0
      %1258 = vmatmul.mubr.bf16.gmra.mxu0 %v962
      %v1259 = vpop.f32.mrf.mxu0
      %v1260 = vadd.f32 %v1180, %v1259
      %v1261 = vpop.f32.mrf.mxu0
      %v1262 = vpop.f32.mrf.mxu0
      %v1263 = vadd.f32 %v1180, %v1262
      %v1264 = vpop.f32.mrf.mxu0
      %1265 = vmatprep.mubr.bf16.mxu0 0
      %1266 = vmatmul.mubr.bf16.gmra.mxu0 %v965
      %v1267 = vpop.f32.mrf.mxu0
      %v1268 = vadd.f32 %v1180, %v1267
      %v1269 = vpop.f32.mrf.mxu0
      %v1270 = vpop.f32.mrf.mxu0
      %v1271 = vadd.f32 %v1180, %v1270
      %v1272 = vpop.f32.mrf.mxu0
      %1273 = vmatprep.mubr.bf16.mxu0 0
      %1274 = vmatmul.mubr.bf16.gmra.mxu0 %v968
      %v1275 = vpop.f32.mrf.mxu0
      %v1276 = vadd.f32 %v1180, %v1275
      %v1277 = vpop.f32.mrf.mxu0
      %v1278 = vpop.f32.mrf.mxu0
      %v1279 = vadd.f32 %v1180, %v1278
      %v1280 = vpop.f32.mrf.mxu0
      %1281 = vmatprep.mubr.bf16.mxu0 0
      %1282 = vmatmul.mubr.bf16.gmra.mxu0 %v971
      %v1283 = vpop.f32.mrf.mxu0
      %v1284 = vadd.f32 %v1180, %v1283
      %v1285 = vpop.f32.mrf.mxu0
      %v1286 = vpop.f32.mrf.mxu0
      %v1287 = vadd.f32 %v1180, %v1286
      %v1288 = vpop.f32.mrf.mxu0
      %1289 = vmatprep.mubr.bf16.mxu0 0
      %1290 = vmatmul.mubr.bf16.gmra.mxu0 %v974
      %v1291 = vpop.f32.mrf.mxu0
      %v1292 = vadd.f32 %v1180, %v1291
      %v1293 = vpop.f32.mrf.mxu0
      %v1294 = vpop.f32.mrf.mxu0
      %v1295 = vadd.f32 %v1180, %v1294
      %v1296 = vpop.f32.mrf.mxu0
      %1297 = vmatprep.mubr.bf16.mxu0 0
      %1298 = vmatmul.mubr.bf16.gmra.mxu0 %v977
      %v1299 = vpop.f32.mrf.mxu0
      %v1300 = vadd.f32 %v1180, %v1299
      %v1301 = vpop.f32.mrf.mxu0
      %v1302 = vpop.f32.mrf.mxu0
      %v1303 = vadd.f32 %v1180, %v1302
      %v1304 = vpop.f32.mrf.mxu0
      %1305 = vmatprep.mubr.bf16.mxu0 0
      %1306 = vmatmul.mubr.bf16.gmra.mxu0 %v980
      %v1307 = vpop.f32.mrf.mxu0
      %v1308 = vadd.f32 %v1180, %v1307
      %v1309 = vpop.f32.mrf.mxu0
      %v1310 = vpop.f32.mrf.mxu0
      %v1311 = vadd.f32 %v1180, %v1310
      %v1312 = vpop.f32.mrf.mxu0
      %1313 = vmatprep.mubr.bf16.mxu0 0
      %1314 = vmatmul.mubr.bf16.gmra.mxu0 %v983
      %v1315 = vpop.f32.mrf.mxu0
      %v1316 = vadd.f32 %v1180, %v1315
      %v1317 = vpop.f32.mrf.mxu0
      %v1318 = vpop.f32.mrf.mxu0
      %v1319 = vadd.f32 %v1180, %v1318
      %v1320 = vpop.f32.mrf.mxu0
      %1321 = vmatprep.mubr.bf16.mxu0 0
      %1322 = vmatmul.mubr.bf16.gmra.mxu0 %v986
      %v1323 = vpop.f32.mrf.mxu0
      %v1324 = vadd.f32 %v1180, %v1323
      %v1325 = vpop.f32.mrf.mxu0
      %v1326 = vpop.f32.mrf.mxu0
      %v1327 = vadd.f32 %v1180, %v1326
      %v1328 = vpop.f32.mrf.mxu0
      %1329 = vmatprep.mubr.bf16.mxu0 0
      %1330 = vmatmul.mubr.bf16.gmra.mxu0 %v989
      %v1331 = vpop.f32.mrf.mxu0
      %v1332 = vadd.f32 %v1180, %v1331
      %v1333 = vpop.f32.mrf.mxu0
      %v1334 = vpop.f32.mrf.mxu0
      %v1335 = vadd.f32 %v1180, %v1334
      %v1336 = vpop.f32.mrf.mxu0
      %1337 = vmatprep.mubr.bf16.mxu0 0
      %1338 = vmatmul.mubr.bf16.gmra.mxu0 %v992
      %v1339 = vpop.f32.mrf.mxu0
      %v1340 = vadd.f32 %v1180, %v1339
      %v1341 = vpop.f32.mrf.mxu0
      %v1342 = vpop.f32.mrf.mxu0
      %v1343 = vadd.f32 %v1180, %v1342
      %v1344 = vpop.f32.mrf.mxu0
      %1345 = vdwg.mxu0
      %v1346 = vpack.c.bf16 %v1223, %v1220
      %v1347 = vpack.c.bf16 %v1231, %v1228
      %v1348 = vpack.c.bf16 %v1239, %v1236
      %v1349 = vpack.c.bf16 %v1247, %v1244
      %v1350 = vpack.c.bf16 %v1255, %v1252
      %v1351 = vpack.c.bf16 %v1263, %v1260
      %v1352 = vpack.c.bf16 %v1271, %v1268
      %v1353 = vpack.c.bf16 %v1279, %v1276
      %v1354 = vpack.c.bf16 %v1287, %v1284
      %v1355 = vpack.c.bf16 %v1295, %v1292
      %v1356 = vpack.c.bf16 %v1303, %v1300
      %v1357 = vpack.c.bf16 %v1311, %v1308
      %v1358 = vpack.c.bf16 %v1319, %v1316
      %v1359 = vpack.c.bf16 %v1327, %v1324
      %v1360 = vpack.c.bf16 %v1335, %v1332
      %v1361 = vpack.c.bf16 %v1343, %v1340
      %vm1362 = vcmask 15360
      %v1364 = vsel %vm1362, %v842, 0
      %v1367 = vsel %vm1362, %v843, 0
      %v1370 = vsel %vm1362, %v844, 0
      %v1373 = vsel %vm1362, %v845, 0
      %v1376 = vsel %vm1362, %v846, 0
      %v1379 = vsel %vm1362, %v847, 0
      %v1382 = vsel %vm1362, %v848, 0
      %v1385 = vsel %vm1362, %v849, 0
      %v1388 = vsel %vm1362, %v850, 0
      %v1391 = vsel %vm1362, %v851, 0
      %v1394 = vsel %vm1362, %v852, 0
      %v1397 = vsel %vm1362, %v853, 0
      %v1400 = vsel %vm1362, %v854, 0
      %v1403 = vsel %vm1362, %v855, 0
      %v1406 = vsel %vm1362, %v856, 0
      %v1409 = vsel %vm1362, %v857, 0
      %v1412 = vsel %vm1362, %v1158, 0
      %v1415 = vsel %vm1362, %v1159, 0
      %v1418 = vsel %vm1362, %v1160, 0
      %v1421 = vsel %vm1362, %v1161, 0
      %v1424 = vsel %vm1362, %v1162, 0
      %v1427 = vsel %vm1362, %v1163, 0
      %v1430 = vsel %vm1362, %v1164, 0
      %v1433 = vsel %vm1362, %v1165, 0
      %v1436 = vsel %vm1362, %v1166, 0
      %v1439 = vsel %vm1362, %v1167, 0
      %v1442 = vsel %vm1362, %v1168, 0
      %v1445 = vsel %vm1362, %v1169, 0
      %v1448 = vsel %vm1362, %v1170, 0
      %v1451 = vsel %vm1362, %v1171, 0
      %v1454 = vsel %vm1362, %v1172, 0
      %v1457 = vsel %vm1362, %v1173, 0
      %1459 = vmatprep.subr.bf16.mxu0 0
      %1460 = vmatpush1.bf16.xpose.msra.mxu0 %v1433
      %1461 = vmatprep.subr.bf16.mxu0 0
      %1462 = vmatpush1.bf16.xpose.msra.mxu0 %v1430
      %1463 = vmatprep.subr.bf16.mxu0 0
      %1464 = vmatpush1.bf16.xpose.msra.mxu0 %v1427
      %1465 = vmatprep.subr.bf16.mxu0 0
      %1466 = vmatpush1.bf16.xpose.msra.mxu0 %v1424
      %1467 = vmatprep.subr.bf16.mxu0 0
      %1468 = vmatpush1.bf16.xpose.msra.mxu0 %v1421
      %1469 = vmatprep.subr.bf16.mxu0 0
      %1470 = vmatpush1.bf16.xpose.msra.mxu0 %v1418
      %1471 = vmatprep.subr.bf16.mxu0 0
      %1472 = vmatpush1.bf16.xpose.msra.mxu0 %v1415
      %1473 = vmatprep.subr.bf16.mxu0 0
      %1474 = vmatpush1.bf16.xpose.msra.mxu0 %v1412
      %1475 = vmatprep.subr.bf16.mxu0 0
      %1476 = vmatpush2.bf16.xpose.msra.mxu0 %v1457
      %1477 = vmatprep.subr.bf16.mxu0 0
      %1478 = vmatpush2.bf16.xpose.msra.mxu0 %v1454
      %1479 = vmatprep.subr.bf16.mxu0 0
      %1480 = vmatpush2.bf16.xpose.msra.mxu0 %v1451
      %1481 = vmatprep.subr.bf16.mxu0 0
      %1482 = vmatpush2.bf16.xpose.msra.mxu0 %v1448
      %1483 = vmatprep.subr.bf16.mxu0 0
      %1484 = vmatpush2.bf16.xpose.msra.mxu0 %v1445
      %1485 = vmatprep.subr.bf16.mxu0 0
      %1486 = vmatpush2.bf16.xpose.msra.mxu0 %v1442
      %1487 = vmatprep.subr.bf16.mxu0 0
      %1488 = vmatpush2.bf16.xpose.msra.mxu0 %v1439
      %1489 = vmatprep.subr.bf16.mxu0 0
      %1490 = vmatpush2.bf16.xpose.msra.mxu0 %v1436
      %1491 = vmatprep.mubr.bf16.mxu0 0
      %1492 = vmatmul.mubr.bf16.gmra.mxu0 %v1364
      %v1493 = vpop.f32.mrf.mxu0
      %v1494 = vadd.f32 0.0, %v1493
      %v1495 = vpop.f32.mrf.mxu0
      %v1496 = vadd.f32 0.0, %v1495
      %v1497 = vpop.f32.mrf.mxu0
      %v1498 = vadd.f32 0.0, %v1497
      %v1499 = vpop.f32.mrf.mxu0
      %v1500 = vadd.f32 0.0, %v1499
      %1501 = vmatprep.mubr.bf16.mxu0 0
      %1502 = vmatmul.mubr.bf16.gmra.mxu0 %v1367
      %v1503 = vpop.f32.mrf.mxu0
      %v1504 = vadd.f32 0.0, %v1503
      %v1505 = vpop.f32.mrf.mxu0
      %v1506 = vadd.f32 0.0, %v1505
      %v1507 = vpop.f32.mrf.mxu0
      %v1508 = vadd.f32 0.0, %v1507
      %v1509 = vpop.f32.mrf.mxu0
      %v1510 = vadd.f32 0.0, %v1509
      %1511 = vmatprep.mubr.bf16.mxu0 0
      %1512 = vmatmul.mubr.bf16.gmra.mxu0 %v1370
      %v1513 = vpop.f32.mrf.mxu0
      %v1514 = vadd.f32 0.0, %v1513
      %v1515 = vpop.f32.mrf.mxu0
      %v1516 = vadd.f32 0.0, %v1515
      %v1517 = vpop.f32.mrf.mxu0
      %v1518 = vadd.f32 0.0, %v1517
      %v1519 = vpop.f32.mrf.mxu0
      %v1520 = vadd.f32 0.0, %v1519
      %1521 = vmatprep.mubr.bf16.mxu0 0
      %1522 = vmatmul.mubr.bf16.gmra.mxu0 %v1373
      %v1523 = vpop.f32.mrf.mxu0
      %v1524 = vadd.f32 0.0, %v1523
      %v1525 = vpop.f32.mrf.mxu0
      %v1526 = vadd.f32 0.0, %v1525
      %v1527 = vpop.f32.mrf.mxu0
      %v1528 = vadd.f32 0.0, %v1527
      %v1529 = vpop.f32.mrf.mxu0
      %v1530 = vadd.f32 0.0, %v1529
      %1531 = vmatprep.mubr.bf16.mxu0 0
      %1532 = vmatmul.mubr.bf16.gmra.mxu0 %v1376
      %v1533 = vpop.f32.mrf.mxu0
      %v1534 = vadd.f32 0.0, %v1533
      %v1535 = vpop.f32.mrf.mxu0
      %v1536 = vadd.f32 0.0, %v1535
      %v1537 = vpop.f32.mrf.mxu0
      %v1538 = vadd.f32 0.0, %v1537
      %v1539 = vpop.f32.mrf.mxu0
      %v1540 = vadd.f32 0.0, %v1539
      %1541 = vmatprep.mubr.bf16.mxu0 0
      %1542 = vmatmul.mubr.bf16.gmra.mxu0 %v1379
      %v1543 = vpop.f32.mrf.mxu0
      %v1544 = vadd.f32 0.0, %v1543
      %v1545 = vpop.f32.mrf.mxu0
      %v1546 = vadd.f32 0.0, %v1545
      %v1547 = vpop.f32.mrf.mxu0
      %v1548 = vadd.f32 0.0, %v1547
      %v1549 = vpop.f32.mrf.mxu0
      %v1550 = vadd.f32 0.0, %v1549
      %1551 = vmatprep.mubr.bf16.mxu0 0
      %1552 = vmatmul.mubr.bf16.gmra.mxu0 %v1382
      %v1553 = vpop.f32.mrf.mxu0
      %v1554 = vadd.f32 0.0, %v1553
      %v1555 = vpop.f32.mrf.mxu0
      %v1556 = vadd.f32 0.0, %v1555
      %v1557 = vpop.f32.mrf.mxu0
      %v1558 = vadd.f32 0.0, %v1557
      %v1559 = vpop.f32.mrf.mxu0
      %v1560 = vadd.f32 0.0, %v1559
      %1561 = vmatprep.mubr.bf16.mxu0 0
      %1562 = vmatmul.mubr.bf16.gmra.mxu0 %v1385
      %v1563 = vpop.f32.mrf.mxu0
      %v1564 = vadd.f32 0.0, %v1563
      %v1565 = vpop.f32.mrf.mxu0
      %v1566 = vadd.f32 0.0, %v1565
      %v1567 = vpop.f32.mrf.mxu0
      %v1568 = vadd.f32 0.0, %v1567
      %v1569 = vpop.f32.mrf.mxu0
      %v1570 = vadd.f32 0.0, %v1569
      %1571 = vmatprep.mubr.bf16.mxu0 0
      %1572 = vmatmul.mubr.bf16.gmra.mxu0 %v1388
      %v1573 = vpop.f32.mrf.mxu0
      %v1574 = vadd.f32 0.0, %v1573
      %v1575 = vpop.f32.mrf.mxu0
      %v1576 = vadd.f32 0.0, %v1575
      %v1577 = vpop.f32.mrf.mxu0
      %v1578 = vadd.f32 0.0, %v1577
      %v1579 = vpop.f32.mrf.mxu0
      %v1580 = vadd.f32 0.0, %v1579
      %1581 = vmatprep.mubr.bf16.mxu0 0
      %1582 = vmatmul.mubr.bf16.gmra.mxu0 %v1391
      %v1583 = vpop.f32.mrf.mxu0
      %v1584 = vadd.f32 0.0, %v1583
      %v1585 = vpop.f32.mrf.mxu0
      %v1586 = vadd.f32 0.0, %v1585
      %v1587 = vpop.f32.mrf.mxu0
      %v1588 = vadd.f32 0.0, %v1587
      %v1589 = vpop.f32.mrf.mxu0
      %v1590 = vadd.f32 0.0, %v1589
      %1591 = vmatprep.mubr.bf16.mxu0 0
      %1592 = vmatmul.mubr.bf16.gmra.mxu0 %v1394
      %v1593 = vpop.f32.mrf.mxu0
      %v1594 = vadd.f32 0.0, %v1593
      %v1595 = vpop.f32.mrf.mxu0
      %v1596 = vadd.f32 0.0, %v1595
      %v1597 = vpop.f32.mrf.mxu0
      %v1598 = vadd.f32 0.0, %v1597
      %v1599 = vpop.f32.mrf.mxu0
      %v1600 = vadd.f32 0.0, %v1599
      %1601 = vmatprep.mubr.bf16.mxu0 0
      %1602 = vmatmul.mubr.bf16.gmra.mxu0 %v1397
      %v1603 = vpop.f32.mrf.mxu0
      %v1604 = vadd.f32 0.0, %v1603
      %v1605 = vpop.f32.mrf.mxu0
      %v1606 = vadd.f32 0.0, %v1605
      %v1607 = vpop.f32.mrf.mxu0
      %v1608 = vadd.f32 0.0, %v1607
      %v1609 = vpop.f32.mrf.mxu0
      %v1610 = vadd.f32 0.0, %v1609
      %1611 = vmatprep.mubr.bf16.mxu0 0
      %1612 = vmatmul.mubr.bf16.gmra.mxu0 %v1400
      %v1613 = vpop.f32.mrf.mxu0
      %v1614 = vadd.f32 0.0, %v1613
      %v1615 = vpop.f32.mrf.mxu0
      %v1616 = vadd.f32 0.0, %v1615
      %v1617 = vpop.f32.mrf.mxu0
      %v1618 = vadd.f32 0.0, %v1617
      %v1619 = vpop.f32.mrf.mxu0
      %v1620 = vadd.f32 0.0, %v1619
      %1621 = vmatprep.mubr.bf16.mxu0 0
      %1622 = vmatmul.mubr.bf16.gmra.mxu0 %v1403
      %v1623 = vpop.f32.mrf.mxu0
      %v1624 = vadd.f32 0.0, %v1623
      %v1625 = vpop.f32.mrf.mxu0
      %v1626 = vadd.f32 0.0, %v1625
      %v1627 = vpop.f32.mrf.mxu0
      %v1628 = vadd.f32 0.0, %v1627
      %v1629 = vpop.f32.mrf.mxu0
      %v1630 = vadd.f32 0.0, %v1629
      %1631 = vmatprep.mubr.bf16.mxu0 0
      %1632 = vmatmul.mubr.bf16.gmra.mxu0 %v1406
      %v1633 = vpop.f32.mrf.mxu0
      %v1634 = vadd.f32 0.0, %v1633
      %v1635 = vpop.f32.mrf.mxu0
      %v1636 = vadd.f32 0.0, %v1635
      %v1637 = vpop.f32.mrf.mxu0
      %v1638 = vadd.f32 0.0, %v1637
      %v1639 = vpop.f32.mrf.mxu0
      %v1640 = vadd.f32 0.0, %v1639
      %1641 = vmatprep.mubr.bf16.mxu0 0
      %1642 = vmatmul.mubr.bf16.gmra.mxu0 %v1409
      %v1643 = vpop.f32.mrf.mxu0
      %v1644 = vadd.f32 0.0, %v1643
      %v1645 = vpop.f32.mrf.mxu0
      %v1646 = vadd.f32 0.0, %v1645
      %v1647 = vpop.f32.mrf.mxu0
      %v1648 = vadd.f32 0.0, %v1647
      %v1649 = vpop.f32.mrf.mxu0
      %v1650 = vadd.f32 0.0, %v1649
      %1651 = vdwg.mxu0
      %v1652 = vmax.f32 %v1494, %v1496
      %1653 = vmax.xlane.f32.xlu0 %v1652
      %v1654 = vpop.xlane.xlu0 %1653
      %v1655 = vmax.f32 %v1498, %v1500
      %1656 = vmax.xlane.f32.xlu0 %v1655
      %v1657 = vpop.xlane.xlu0 %1656
      %v1658 = vmax.f32 %v1504, %v1506
      %1659 = vmax.xlane.f32.xlu0 %v1658
      %v1660 = vpop.xlane.xlu0 %1659
      %v1661 = vmax.f32 %v1508, %v1510
      %1662 = vmax.xlane.f32.xlu0 %v1661
      %v1663 = vpop.xlane.xlu0 %1662
      %v1664 = vmax.f32 %v1514, %v1516
      %1665 = vmax.xlane.f32.xlu0 %v1664
      %v1666 = vpop.xlane.xlu0 %1665
      %v1667 = vmax.f32 %v1518, %v1520
      %1668 = vmax.xlane.f32.xlu0 %v1667
      %v1669 = vpop.xlane.xlu0 %1668
      %v1670 = vmax.f32 %v1524, %v1526
      %1671 = vmax.xlane.f32.xlu0 %v1670
      %v1672 = vpop.xlane.xlu0 %1671
      %v1673 = vmax.f32 %v1528, %v1530
      %1674 = vmax.xlane.f32.xlu0 %v1673
      %v1675 = vpop.xlane.xlu0 %1674
      %v1676 = vmax.f32 %v1534, %v1536
      %1677 = vmax.xlane.f32.xlu0 %v1676
      %v1678 = vpop.xlane.xlu0 %1677
      %v1679 = vmax.f32 %v1538, %v1540
      %1680 = vmax.xlane.f32.xlu0 %v1679
      %v1681 = vpop.xlane.xlu0 %1680
      %v1682 = vmax.f32 %v1544, %v1546
      %1683 = vmax.xlane.f32.xlu0 %v1682
      %v1684 = vpop.xlane.xlu0 %1683
      %v1685 = vmax.f32 %v1548, %v1550
      %1686 = vmax.xlane.f32.xlu0 %v1685
      %v1687 = vpop.xlane.xlu0 %1686
      %v1688 = vmax.f32 %v1554, %v1556
      %1689 = vmax.xlane.f32.xlu0 %v1688
      %v1690 = vpop.xlane.xlu0 %1689
      %v1691 = vmax.f32 %v1558, %v1560
      %1692 = vmax.xlane.f32.xlu0 %v1691
      %v1693 = vpop.xlane.xlu0 %1692
      %v1694 = vmax.f32 %v1564, %v1566
      %1695 = vmax.xlane.f32.xlu0 %v1694
      %v1696 = vpop.xlane.xlu0 %1695
      %v1697 = vmax.f32 %v1568, %v1570
      %1698 = vmax.xlane.f32.xlu0 %v1697
      %v1699 = vpop.xlane.xlu0 %1698
      %v1700 = vmax.f32 %v1574, %v1576
      %1701 = vmax.xlane.f32.xlu0 %v1700
      %v1702 = vpop.xlane.xlu0 %1701
      %v1703 = vmax.f32 %v1578, %v1580
      %1704 = vmax.xlane.f32.xlu0 %v1703
      %v1705 = vpop.xlane.xlu0 %1704
      %v1706 = vmax.f32 %v1584, %v1586
      %1707 = vmax.xlane.f32.xlu0 %v1706
      %v1708 = vpop.xlane.xlu0 %1707
      %v1709 = vmax.f32 %v1588, %v1590
      %1710 = vmax.xlane.f32.xlu0 %v1709
      %v1711 = vpop.xlane.xlu0 %1710
      %v1712 = vmax.f32 %v1594, %v1596
      %1713 = vmax.xlane.f32.xlu0 %v1712
      %v1714 = vpop.xlane.xlu0 %1713
      %v1715 = vmax.f32 %v1598, %v1600
      %1716 = vmax.xlane.f32.xlu0 %v1715
      %v1717 = vpop.xlane.xlu0 %1716
      %v1718 = vmax.f32 %v1604, %v1606
      %1719 = vmax.xlane.f32.xlu0 %v1718
      %v1720 = vpop.xlane.xlu0 %1719
      %v1721 = vmax.f32 %v1608, %v1610
      %1722 = vmax.xlane.f32.xlu0 %v1721
      %v1723 = vpop.xlane.xlu0 %1722
      %v1724 = vmax.f32 %v1614, %v1616
      %1725 = vmax.xlane.f32.xlu0 %v1724
      %v1726 = vpop.xlane.xlu0 %1725
      %v1727 = vmax.f32 %v1618, %v1620
      %1728 = vmax.xlane.f32.xlu0 %v1727
      %v1729 = vpop.xlane.xlu0 %1728
      %v1730 = vmax.f32 %v1624, %v1626
      %1731 = vmax.xlane.f32.xlu0 %v1730
      %v1732 = vpop.xlane.xlu0 %1731
      %v1733 = vmax.f32 %v1628, %v1630
      %1734 = vmax.xlane.f32.xlu0 %v1733
      %v1735 = vpop.xlane.xlu0 %1734
      %v1736 = vmax.f32 %v1634, %v1636
      %1737 = vmax.xlane.f32.xlu0 %v1736
      %v1738 = vpop.xlane.xlu0 %1737
      %v1739 = vmax.f32 %v1638, %v1640
      %1740 = vmax.xlane.f32.xlu0 %v1739
      %v1741 = vpop.xlane.xlu0 %1740
      %v1742 = vmax.f32 %v1644, %v1646
      %1743 = vmax.xlane.f32.xlu0 %v1742
      %v1744 = vpop.xlane.xlu0 %1743
      %v1745 = vmax.f32 %v1648, %v1650
      %1746 = vmax.xlane.f32.xlu0 %v1745
      %v1747 = vpop.xlane.xlu0 %1746
      %v1748 = vsub.f32 %v1494, %v1654
      %v1749 = vsub.f32 %v1496, %v1654
      %v1750 = vsub.f32 %v1498, %v1657
      %v1751 = vsub.f32 %v1500, %v1657
      %v1752 = vsub.f32 %v1504, %v1660
      %v1753 = vsub.f32 %v1506, %v1660
      %v1754 = vsub.f32 %v1508, %v1663
      %v1755 = vsub.f32 %v1510, %v1663
      %v1756 = vsub.f32 %v1514, %v1666
      %v1757 = vsub.f32 %v1516, %v1666
      %v1758 = vsub.f32 %v1518, %v1669
      %v1759 = vsub.f32 %v1520, %v1669
      %v1760 = vsub.f32 %v1524, %v1672
      %v1761 = vsub.f32 %v1526, %v1672
      %v1762 = vsub.f32 %v1528, %v1675
      %v1763 = vsub.f32 %v1530, %v1675
      %v1764 = vsub.f32 %v1534, %v1678
      %v1765 = vsub.f32 %v1536, %v1678
      %v1766 = vsub.f32 %v1538, %v1681
      %v1767 = vsub.f32 %v1540, %v1681
      %v1768 = vsub.f32 %v1544, %v1684
      %v1769 = vsub.f32 %v1546, %v1684
      %v1770 = vsub.f32 %v1548, %v1687
      %v1771 = vsub.f32 %v1550, %v1687
      %v1772 = vsub.f32 %v1554, %v1690
      %v1773 = vsub.f32 %v1556, %v1690
      %v1774 = vsub.f32 %v1558, %v1693
      %v1775 = vsub.f32 %v1560, %v1693
      %v1776 = vsub.f32 %v1564, %v1696
      %v1777 = vsub.f32 %v1566, %v1696
      %v1778 = vsub.f32 %v1568, %v1699
      %v1779 = vsub.f32 %v1570, %v1699
      %v1780 = vsub.f32 %v1574, %v1702
      %v1781 = vsub.f32 %v1576, %v1702
      %v1782 = vsub.f32 %v1578, %v1705
      %v1783 = vsub.f32 %v1580, %v1705
      %v1784 = vsub.f32 %v1584, %v1708
      %v1785 = vsub.f32 %v1586, %v1708
      %v1786 = vsub.f32 %v1588, %v1711
      %v1787 = vsub.f32 %v1590, %v1711
      %v1788 = vsub.f32 %v1594, %v1714
      %v1789 = vsub.f32 %v1596, %v1714
      %v1790 = vsub.f32 %v1598, %v1717
      %v1791 = vsub.f32 %v1600, %v1717
      %v1792 = vsub.f32 %v1604, %v1720
      %v1793 = vsub.f32 %v1606, %v1720
      %v1794 = vsub.f32 %v1608, %v1723
      %v1795 = vsub.f32 %v1610, %v1723
      %v1796 = vsub.f32 %v1614, %v1726
      %v1797 = vsub.f32 %v1616, %v1726
      %v1798 = vsub.f32 %v1618, %v1729
      %v1799 = vsub.f32 %v1620, %v1729
      %v1800 = vsub.f32 %v1624, %v1732
      %v1801 = vsub.f32 %v1626, %v1732
      %v1802 = vsub.f32 %v1628, %v1735
      %v1803 = vsub.f32 %v1630, %v1735
      %v1804 = vsub.f32 %v1634, %v1738
      %v1805 = vsub.f32 %v1636, %v1738
      %v1806 = vsub.f32 %v1638, %v1741
      %v1807 = vsub.f32 %v1640, %v1741
      %v1808 = vsub.f32 %v1644, %v1744
      %v1809 = vsub.f32 %v1646, %v1744
      %v1810 = vsub.f32 %v1648, %v1747
      %v1811 = vsub.f32 %v1650, %v1747
      %v1812 = vmul.f32 %v1748, 1.442695
      %v1813 = vpow.pop %v1812
      %v1814 = vmul.f32 %v1749, 1.442695
      %v1815 = vpow.pop %v1814
      %v1816 = vmul.f32 %v1750, 1.442695
      %v1817 = vpow.pop %v1816
      %v1818 = vmul.f32 %v1751, 1.442695
      %v1819 = vpow.pop %v1818
      %v1820 = vmul.f32 %v1752, 1.442695
      %v1821 = vpow.pop %v1820
      %v1822 = vmul.f32 %v1753, 1.442695
      %v1823 = vpow.pop %v1822
      %v1824 = vmul.f32 %v1754, 1.442695
      %v1825 = vpow.pop %v1824
      %v1826 = vmul.f32 %v1755, 1.442695
      %v1827 = vpow.pop %v1826
      %v1828 = vmul.f32 %v1756, 1.442695
      %v1829 = vpow.pop %v1828
      %v1830 = vmul.f32 %v1757, 1.442695
      %v1831 = vpow.pop %v1830
      %v1832 = vmul.f32 %v1758, 1.442695
      %v1833 = vpow.pop %v1832
      %v1834 = vmul.f32 %v1759, 1.442695
      %v1835 = vpow.pop %v1834
      %v1836 = vmul.f32 %v1760, 1.442695
      %v1837 = vpow.pop %v1836
      %v1838 = vmul.f32 %v1761, 1.442695
      %v1839 = vpow.pop %v1838
      %v1840 = vmul.f32 %v1762, 1.442695
      %v1841 = vpow.pop %v1840
      %v1842 = vmul.f32 %v1763, 1.442695
      %v1843 = vpow.pop %v1842
      %v1844 = vmul.f32 %v1764, 1.442695
      %v1845 = vpow.pop %v1844
      %v1846 = vmul.f32 %v1765, 1.442695
      %v1847 = vpow.pop %v1846
      %v1848 = vmul.f32 %v1766, 1.442695
      %v1849 = vpow.pop %v1848
      %v1850 = vmul.f32 %v1767, 1.442695
      %v1851 = vpow.pop %v1850
      %v1852 = vmul.f32 %v1768, 1.442695
      %v1853 = vpow.pop %v1852
      %v1854 = vmul.f32 %v1769, 1.442695
      %v1855 = vpow.pop %v1854
      %v1856 = vmul.f32 %v1770, 1.442695
      %v1857 = vpow.pop %v1856
      %v1858 = vmul.f32 %v1771, 1.442695
      %v1859 = vpow.pop %v1858
      %v1860 = vmul.f32 %v1772, 1.442695
      %v1861 = vpow.pop %v1860
      %v1862 = vmul.f32 %v1773, 1.442695
      %v1863 = vpow.pop %v1862
      %v1864 = vmul.f32 %v1774, 1.442695
      %v1865 = vpow.pop %v1864
      %v1866 = vmul.f32 %v1775, 1.442695
      %v1867 = vpow.pop %v1866
      %v1868 = vmul.f32 %v1776, 1.442695
      %v1869 = vpow.pop %v1868
      %v1870 = vmul.f32 %v1777, 1.442695
      %v1871 = vpow.pop %v1870
      %v1872 = vmul.f32 %v1778, 1.442695
      %v1873 = vpow.pop %v1872
      %v1874 = vmul.f32 %v1779, 1.442695
      %v1875 = vpow.pop %v1874
      %v1876 = vmul.f32 %v1780, 1.442695
      %v1877 = vpow.pop %v1876
      %v1878 = vmul.f32 %v1781, 1.442695
      %v1879 = vpow.pop %v1878
      %v1880 = vmul.f32 %v1782, 1.442695
      %v1881 = vpow.pop %v1880
      %v1882 = vmul.f32 %v1783, 1.442695
      %v1883 = vpow.pop %v1882
      %v1884 = vmul.f32 %v1784, 1.442695
      %v1885 = vpow.pop %v1884
      %v1886 = vmul.f32 %v1785, 1.442695
      %v1887 = vpow.pop %v1886
      %v1888 = vmul.f32 %v1786, 1.442695
      %v1889 = vpow.pop %v1888
      %v1890 = vmul.f32 %v1787, 1.442695
      %v1891 = vpow.pop %v1890
      %v1892 = vmul.f32 %v1788, 1.442695
      %v1893 = vpow.pop %v1892
      %v1894 = vmul.f32 %v1789, 1.442695
      %v1895 = vpow.pop %v1894
      %v1896 = vmul.f32 %v1790, 1.442695
      %v1897 = vpow.pop %v1896
      %v1898 = vmul.f32 %v1791, 1.442695
      %v1899 = vpow.pop %v1898
      %v1900 = vmul.f32 %v1792, 1.442695
      %v1901 = vpow.pop %v1900
      %v1902 = vmul.f32 %v1793, 1.442695
      %v1903 = vpow.pop %v1902
      %v1904 = vmul.f32 %v1794, 1.442695
      %v1905 = vpow.pop %v1904
      %v1906 = vmul.f32 %v1795, 1.442695
      %v1907 = vpow.pop %v1906
      %v1908 = vmul.f32 %v1796, 1.442695
      %v1909 = vpow.pop %v1908
      %v1910 = vmul.f32 %v1797, 1.442695
      %v1911 = vpow.pop %v1910
      %v1912 = vmul.f32 %v1798, 1.442695
      %v1913 = vpow.pop %v1912
      %v1914 = vmul.f32 %v1799, 1.442695
      %v1915 = vpow.pop %v1914
      %v1916 = vmul.f32 %v1800, 1.442695
      %v1917 = vpow.pop %v1916
      %v1918 = vmul.f32 %v1801, 1.442695
      %v1919 = vpow.pop %v1918
      %v1920 = vmul.f32 %v1802, 1.442695
      %v1921 = vpow.pop %v1920
      %v1922 = vmul.f32 %v1803, 1.442695
      %v1923 = vpow.pop %v1922
      %v1924 = vmul.f32 %v1804, 1.442695
      %v1925 = vpow.pop %v1924
      %v1926 = vmul.f32 %v1805, 1.442695
      %v1927 = vpow.pop %v1926
      %v1928 = vmul.f32 %v1806, 1.442695
      %v1929 = vpow.pop %v1928
      %v1930 = vmul.f32 %v1807, 1.442695
      %v1931 = vpow.pop %v1930
      %v1932 = vmul.f32 %v1808, 1.442695
      %v1933 = vpow.pop %v1932
      %v1934 = vmul.f32 %v1809, 1.442695
      %v1935 = vpow.pop %v1934
      %v1936 = vmul.f32 %v1810, 1.442695
      %v1937 = vpow.pop %v1936
      %v1938 = vmul.f32 %v1811, 1.442695
      %v1939 = vpow.pop %v1938
      %v1940 = vadd.f32 %v1813, %v1815
      %1941 = vadd.xlane.f32.xlu0 %v1940
      %v1942 = vpop.xlane.xlu0 %1941
      %v1943 = vadd.f32 %v1817, %v1819
      %1944 = vadd.xlane.f32.xlu0 %v1943
      %v1945 = vpop.xlane.xlu0 %1944
      %v1946 = vadd.f32 %v1821, %v1823
      %1947 = vadd.xlane.f32.xlu0 %v1946
      %v1948 = vpop.xlane.xlu0 %1947
      %v1949 = vadd.f32 %v1825, %v1827
      %1950 = vadd.xlane.f32.xlu0 %v1949
      %v1951 = vpop.xlane.xlu0 %1950
      %v1952 = vadd.f32 %v1829, %v1831
      %1953 = vadd.xlane.f32.xlu0 %v1952
      %v1954 = vpop.xlane.xlu0 %1953
      %v1955 = vadd.f32 %v1833, %v1835
      %1956 = vadd.xlane.f32.xlu0 %v1955
      %v1957 = vpop.xlane.xlu0 %1956
      %v1958 = vadd.f32 %v1837, %v1839
      %1959 = vadd.xlane.f32.xlu0 %v1958
      %v1960 = vpop.xlane.xlu0 %1959
      %v1961 = vadd.f32 %v1841, %v1843
      %1962 = vadd.xlane.f32.xlu0 %v1961
      %v1963 = vpop.xlane.xlu0 %1962
      %v1964 = vadd.f32 %v1845, %v1847
      %1965 = vadd.xlane.f32.xlu0 %v1964
      %v1966 = vpop.xlane.xlu0 %1965
      %v1967 = vadd.f32 %v1849, %v1851
      %1968 = vadd.xlane.f32.xlu0 %v1967
      %v1969 = vpop.xlane.xlu0 %1968
      %v1970 = vadd.f32 %v1853, %v1855
      %1971 = vadd.xlane.f32.xlu0 %v1970
      %v1972 = vpop.xlane.xlu0 %1971
      %v1973 = vadd.f32 %v1857, %v1859
      %1974 = vadd.xlane.f32.xlu0 %v1973
      %v1975 = vpop.xlane.xlu0 %1974
      %v1976 = vadd.f32 %v1861, %v1863
      %1977 = vadd.xlane.f32.xlu0 %v1976
      %v1978 = vpop.xlane.xlu0 %1977
      %v1979 = vadd.f32 %v1865, %v1867
      %1980 = vadd.xlane.f32.xlu0 %v1979
      %v1981 = vpop.xlane.xlu0 %1980
      %v1982 = vadd.f32 %v1869, %v1871
      %1983 = vadd.xlane.f32.xlu0 %v1982
      %v1984 = vpop.xlane.xlu0 %1983
      %v1985 = vadd.f32 %v1873, %v1875
      %1986 = vadd.xlane.f32.xlu0 %v1985
      %v1987 = vpop.xlane.xlu0 %1986
      %v1988 = vadd.f32 %v1877, %v1879
      %1989 = vadd.xlane.f32.xlu0 %v1988
      %v1990 = vpop.xlane.xlu0 %1989
      %v1991 = vadd.f32 %v1881, %v1883
      %1992 = vadd.xlane.f32.xlu0 %v1991
      %v1993 = vpop.xlane.xlu0 %1992
      %v1994 = vadd.f32 %v1885, %v1887
      %1995 = vadd.xlane.f32.xlu0 %v1994
      %v1996 = vpop.xlane.xlu0 %1995
      %v1997 = vadd.f32 %v1889, %v1891
      %1998 = vadd.xlane.f32.xlu0 %v1997
      %v1999 = vpop.xlane.xlu0 %1998
      %v2000 = vadd.f32 %v1893, %v1895
      %2001 = vadd.xlane.f32.xlu0 %v2000
      %v2002 = vpop.xlane.xlu0 %2001
      %v2003 = vadd.f32 %v1897, %v1899
      %2004 = vadd.xlane.f32.xlu0 %v2003
      %v2005 = vpop.xlane.xlu0 %2004
      %v2006 = vadd.f32 %v1901, %v1903
      %2007 = vadd.xlane.f32.xlu0 %v2006
      %v2008 = vpop.xlane.xlu0 %2007
      %v2009 = vadd.f32 %v1905, %v1907
      %2010 = vadd.xlane.f32.xlu0 %v2009
      %v2011 = vpop.xlane.xlu0 %2010
      %v2012 = vadd.f32 %v1909, %v1911
      %2013 = vadd.xlane.f32.xlu0 %v2012
      %v2014 = vpop.xlane.xlu0 %2013
      %v2015 = vadd.f32 %v1913, %v1915
      %2016 = vadd.xlane.f32.xlu0 %v2015
      %v2017 = vpop.xlane.xlu0 %2016
      %v2018 = vadd.f32 %v1917, %v1919
      %2019 = vadd.xlane.f32.xlu0 %v2018
      %v2020 = vpop.xlane.xlu0 %2019
      %v2021 = vadd.f32 %v1921, %v1923
      %2022 = vadd.xlane.f32.xlu0 %v2021
      %v2023 = vpop.xlane.xlu0 %2022
      %v2024 = vadd.f32 %v1925, %v1927
      %2025 = vadd.xlane.f32.xlu0 %v2024
      %v2026 = vpop.xlane.xlu0 %2025
      %v2027 = vadd.f32 %v1929, %v1931
      %2028 = vadd.xlane.f32.xlu0 %v2027
      %v2029 = vpop.xlane.xlu0 %2028
      %v2030 = vadd.f32 %v1933, %v1935
      %2031 = vadd.xlane.f32.xlu0 %v2030
      %v2032 = vpop.xlane.xlu0 %2031
      %v2033 = vadd.f32 %v1937, %v1939
      %2034 = vadd.xlane.f32.xlu0 %v2033
      %v2035 = vpop.xlane.xlu0 %2034
      %v2036 = vrcp.pop %v1942
      %v2037 = vrcp.pop %v1945
      %v2038 = vrcp.pop %v1948
      %v2039 = vrcp.pop %v1951
      %v2040 = vrcp.pop %v1954
      %v2041 = vrcp.pop %v1957
      %v2042 = vrcp.pop %v1960
      %v2043 = vrcp.pop %v1963
      %v2044 = vrcp.pop %v1966
      %v2045 = vrcp.pop %v1969
      %v2046 = vrcp.pop %v1972
      %v2047 = vrcp.pop %v1975
      %v2048 = vrcp.pop %v1978
      %v2049 = vrcp.pop %v1981
      %v2050 = vrcp.pop %v1984
      %v2051 = vrcp.pop %v1987
      %v2052 = vrcp.pop %v1990
      %v2053 = vrcp.pop %v1993
      %v2054 = vrcp.pop %v1996
      %v2055 = vrcp.pop %v1999
      %v2056 = vrcp.pop %v2002
      %v2057 = vrcp.pop %v2005
      %v2058 = vrcp.pop %v2008
      %v2059 = vrcp.pop %v2011
      %v2060 = vrcp.pop %v2014
      %v2061 = vrcp.pop %v2017
      %v2062 = vrcp.pop %v2020
      %v2063 = vrcp.pop %v2023
      %v2064 = vrcp.pop %v2026
      %v2065 = vrcp.pop %v2029
      %v2066 = vrcp.pop %v2032
      %v2067 = vrcp.pop %v2035
      %v2068 = vmul.f32 %v1813, %v2036
      %v2069 = vmul.f32 %v1815, %v2036
      %v2070 = vmul.f32 %v1817, %v2037
      %v2071 = vmul.f32 %v1819, %v2037
      %v2072 = vmul.f32 %v1821, %v2038
      %v2073 = vmul.f32 %v1823, %v2038
      %v2074 = vmul.f32 %v1825, %v2039
      %v2075 = vmul.f32 %v1827, %v2039
      %v2076 = vmul.f32 %v1829, %v2040
      %v2077 = vmul.f32 %v1831, %v2040
      %v2078 = vmul.f32 %v1833, %v2041
      %v2079 = vmul.f32 %v1835, %v2041
      %v2080 = vmul.f32 %v1837, %v2042
      %v2081 = vmul.f32 %v1839, %v2042
      %v2082 = vmul.f32 %v1841, %v2043
      %v2083 = vmul.f32 %v1843, %v2043
      %v2084 = vmul.f32 %v1845, %v2044
      %v2085 = vmul.f32 %v1847, %v2044
      %v2086 = vmul.f32 %v1849, %v2045
      %v2087 = vmul.f32 %v1851, %v2045
      %v2088 = vmul.f32 %v1853, %v2046
      %v2089 = vmul.f32 %v1855, %v2046
      %v2090 = vmul.f32 %v1857, %v2047
      %v2091 = vmul.f32 %v1859, %v2047
      %v2092 = vmul.f32 %v1861, %v2048
      %v2093 = vmul.f32 %v1863, %v2048
      %v2094 = vmul.f32 %v1865, %v2049
      %v2095 = vmul.f32 %v1867, %v2049
      %v2096 = vmul.f32 %v1869, %v2050
      %v2097 = vmul.f32 %v1871, %v2050
      %v2098 = vmul.f32 %v1873, %v2051
      %v2099 = vmul.f32 %v1875, %v2051
      %v2100 = vmul.f32 %v1877, %v2052
      %v2101 = vmul.f32 %v1879, %v2052
      %v2102 = vmul.f32 %v1881, %v2053
      %v2103 = vmul.f32 %v1883, %v2053
      %v2104 = vmul.f32 %v1885, %v2054
      %v2105 = vmul.f32 %v1887, %v2054
      %v2106 = vmul.f32 %v1889, %v2055
      %v2107 = vmul.f32 %v1891, %v2055
      %v2108 = vmul.f32 %v1893, %v2056
      %v2109 = vmul.f32 %v1895, %v2056
      %v2110 = vmul.f32 %v1897, %v2057
      %v2111 = vmul.f32 %v1899, %v2057
      %v2112 = vmul.f32 %v1901, %v2058
      %v2113 = vmul.f32 %v1903, %v2058
      %v2114 = vmul.f32 %v1905, %v2059
      %v2115 = vmul.f32 %v1907, %v2059
      %v2116 = vmul.f32 %v1909, %v2060
      %v2117 = vmul.f32 %v1911, %v2060
      %v2118 = vmul.f32 %v1913, %v2061
      %v2119 = vmul.f32 %v1915, %v2061
      %v2120 = vmul.f32 %v1917, %v2062
      %v2121 = vmul.f32 %v1919, %v2062
      %v2122 = vmul.f32 %v1921, %v2063
      %v2123 = vmul.f32 %v1923, %v2063
      %v2124 = vmul.f32 %v1925, %v2064
      %v2125 = vmul.f32 %v1927, %v2064
      %v2126 = vmul.f32 %v1929, %v2065
      %v2127 = vmul.f32 %v1931, %v2065
      %v2128 = vmul.f32 %v1933, %v2066
      %v2129 = vmul.f32 %v1935, %v2066
      %v2130 = vmul.f32 %v1937, %v2067
      %v2131 = vmul.f32 %v1939, %v2067
      %v2132 = vpack.c.bf16 %v2070, %v2068
      %v2133 = vpack.c.bf16 %v2071, %v2069
      %v2134 = vpack.c.bf16 %v2074, %v2072
      %v2135 = vpack.c.bf16 %v2075, %v2073
      %v2136 = vpack.c.bf16 %v2078, %v2076
      %v2137 = vpack.c.bf16 %v2079, %v2077
      %v2138 = vpack.c.bf16 %v2082, %v2080
      %v2139 = vpack.c.bf16 %v2083, %v2081
      %v2140 = vpack.c.bf16 %v2086, %v2084
      %v2141 = vpack.c.bf16 %v2087, %v2085
      %v2142 = vpack.c.bf16 %v2090, %v2088
      %v2143 = vpack.c.bf16 %v2091, %v2089
      %v2144 = vpack.c.bf16 %v2094, %v2092
      %v2145 = vpack.c.bf16 %v2095, %v2093
      %v2146 = vpack.c.bf16 %v2098, %v2096
      %v2147 = vpack.c.bf16 %v2099, %v2097
      %v2148 = vpack.c.bf16 %v2102, %v2100
      %v2149 = vpack.c.bf16 %v2103, %v2101
      %v2150 = vpack.c.bf16 %v2106, %v2104
      %v2151 = vpack.c.bf16 %v2107, %v2105
      %v2152 = vpack.c.bf16 %v2110, %v2108
      %v2153 = vpack.c.bf16 %v2111, %v2109
      %v2154 = vpack.c.bf16 %v2114, %v2112
      %v2155 = vpack.c.bf16 %v2115, %v2113
      %v2156 = vpack.c.bf16 %v2118, %v2116
      %v2157 = vpack.c.bf16 %v2119, %v2117
      %v2158 = vpack.c.bf16 %v2122, %v2120
      %v2159 = vpack.c.bf16 %v2123, %v2121
      %v2160 = vpack.c.bf16 %v2126, %v2124
      %v2161 = vpack.c.bf16 %v2127, %v2125
      %v2162 = vpack.c.bf16 %v2130, %v2128
      %v2163 = vpack.c.bf16 %v2131, %v2129
      %2164 = vmatprep.subr.bf16.mxu0 0
      %2165 = vmatpush1.bf16.msra.mxu0 %v1353
      %2166 = vmatprep.subr.bf16.mxu0 0
      %2167 = vmatpush1.bf16.msra.mxu0 %v1352
      %2168 = vmatprep.subr.bf16.mxu0 0
      %2169 = vmatpush1.bf16.msra.mxu0 %v1351
      %2170 = vmatprep.subr.bf16.mxu0 0
      %2171 = vmatpush1.bf16.msra.mxu0 %v1350
      %2172 = vmatprep.subr.bf16.mxu0 0
      %2173 = vmatpush1.bf16.msra.mxu0 %v1349
      %2174 = vmatprep.subr.bf16.mxu0 0
      %2175 = vmatpush1.bf16.msra.mxu0 %v1348
      %2176 = vmatprep.subr.bf16.mxu0 0
      %2177 = vmatpush1.bf16.msra.mxu0 %v1347
      %2178 = vmatprep.subr.bf16.mxu0 0
      %2179 = vmatpush1.bf16.msra.mxu0 %v1346
      %2180 = vmatprep.subr.bf16.mxu0 0
      %2181 = vmatpush2.bf16.msra.mxu0 %v1361
      %2182 = vmatprep.subr.bf16.mxu0 0
      %2183 = vmatpush2.bf16.msra.mxu0 %v1360
      %2184 = vmatprep.subr.bf16.mxu0 0
      %2185 = vmatpush2.bf16.msra.mxu0 %v1359
      %2186 = vmatprep.subr.bf16.mxu0 0
      %2187 = vmatpush2.bf16.msra.mxu0 %v1358
      %2188 = vmatprep.subr.bf16.mxu0 0
      %2189 = vmatpush2.bf16.msra.mxu0 %v1357
      %2190 = vmatprep.subr.bf16.mxu0 0
      %2191 = vmatpush2.bf16.msra.mxu0 %v1356
      %2192 = vmatprep.subr.bf16.mxu0 0
      %2193 = vmatpush2.bf16.msra.mxu0 %v1355
      %2194 = vmatprep.subr.bf16.mxu0 0
      %2195 = vmatpush2.bf16.msra.mxu0 %v1354
      %2196 = vmatprep.mubr.bf16.mxu0 %v2133
      %2197 = vmatmul.mubr.bf16.gmra.mxu0 %v2132
      %v2198 = vpop.f32.mrf.mxu0
      %v2199 = vadd.f32 0.0, %v2198
      %v2200 = vpop.f32.mrf.mxu0
      %v2201 = vpop.f32.mrf.mxu0
      %v2202 = vadd.f32 0.0, %v2201
      %v2203 = vpop.f32.mrf.mxu0
      %2204 = vmatprep.mubr.bf16.mxu0 %v2135
      %2205 = vmatmul.mubr.bf16.gmra.mxu0 %v2134
      %v2206 = vpop.f32.mrf.mxu0
      %v2207 = vadd.f32 0.0, %v2206
      %v2208 = vpop.f32.mrf.mxu0
      %v2209 = vpop.f32.mrf.mxu0
      %v2210 = vadd.f32 0.0, %v2209
      %v2211 = vpop.f32.mrf.mxu0
      %2212 = vmatprep.mubr.bf16.mxu0 %v2137
      %2213 = vmatmul.mubr.bf16.gmra.mxu0 %v2136
      %v2214 = vpop.f32.mrf.mxu0
      %v2215 = vadd.f32 0.0, %v2214
      %v2216 = vpop.f32.mrf.mxu0
      %v2217 = vpop.f32.mrf.mxu0
      %v2218 = vadd.f32 0.0, %v2217
      %v2219 = vpop.f32.mrf.mxu0
      %2220 = vmatprep.mubr.bf16.mxu0 %v2139
      %2221 = vmatmul.mubr.bf16.gmra.mxu0 %v2138
      %v2222 = vpop.f32.mrf.mxu0
      %v2223 = vadd.f32 0.0, %v2222
      %v2224 = vpop.f32.mrf.mxu0
      %v2225 = vpop.f32.mrf.mxu0
      %v2226 = vadd.f32 0.0, %v2225
      %v2227 = vpop.f32.mrf.mxu0
      %2228 = vmatprep.mubr.bf16.mxu0 %v2141
      %2229 = vmatmul.mubr.bf16.gmra.mxu0 %v2140
      %v2230 = vpop.f32.mrf.mxu0
      %v2231 = vadd.f32 0.0, %v2230
      %v2232 = vpop.f32.mrf.mxu0
      %v2233 = vpop.f32.mrf.mxu0
      %v2234 = vadd.f32 0.0, %v2233
      %v2235 = vpop.f32.mrf.mxu0
      %2236 = vmatprep.mubr.bf16.mxu0 %v2143
      %2237 = vmatmul.mubr.bf16.gmra.mxu0 %v2142
      %v2238 = vpop.f32.mrf.mxu0
      %v2239 = vadd.f32 0.0, %v2238
      %v2240 = vpop.f32.mrf.mxu0
      %v2241 = vpop.f32.mrf.mxu0
      %v2242 = vadd.f32 0.0, %v2241
      %v2243 = vpop.f32.mrf.mxu0
      %2244 = vmatprep.mubr.bf16.mxu0 %v2145
      %2245 = vmatmul.mubr.bf16.gmra.mxu0 %v2144
      %v2246 = vpop.f32.mrf.mxu0
      %v2247 = vadd.f32 0.0, %v2246
      %v2248 = vpop.f32.mrf.mxu0
      %v2249 = vpop.f32.mrf.mxu0
      %v2250 = vadd.f32 0.0, %v2249
      %v2251 = vpop.f32.mrf.mxu0
      %2252 = vmatprep.mubr.bf16.mxu0 %v2147
      %2253 = vmatmul.mubr.bf16.gmra.mxu0 %v2146
      %v2254 = vpop.f32.mrf.mxu0
      %v2255 = vadd.f32 0.0, %v2254
      %v2256 = vpop.f32.mrf.mxu0
      %v2257 = vpop.f32.mrf.mxu0
      %v2258 = vadd.f32 0.0, %v2257
      %v2259 = vpop.f32.mrf.mxu0
      %2260 = vmatprep.mubr.bf16.mxu0 %v2149
      %2261 = vmatmul.mubr.bf16.gmra.mxu0 %v2148
      %v2262 = vpop.f32.mrf.mxu0
      %v2263 = vadd.f32 0.0, %v2262
      %v2264 = vpop.f32.mrf.mxu0
      %v2265 = vpop.f32.mrf.mxu0
      %v2266 = vadd.f32 0.0, %v2265
      %v2267 = vpop.f32.mrf.mxu0
      %2268 = vmatprep.mubr.bf16.mxu0 %v2151
      %2269 = vmatmul.mubr.bf16.gmra.mxu0 %v2150
      %v2270 = vpop.f32.mrf.mxu0
      %v2271 = vadd.f32 0.0, %v2270
      %v2272 = vpop.f32.mrf.mxu0
      %v2273 = vpop.f32.mrf.mxu0
      %v2274 = vadd.f32 0.0, %v2273
      %v2275 = vpop.f32.mrf.mxu0
      %2276 = vmatprep.mubr.bf16.mxu0 %v2153
      %2277 = vmatmul.mubr.bf16.gmra.mxu0 %v2152
      %v2278 = vpop.f32.mrf.mxu0
      %v2279 = vadd.f32 0.0, %v2278
      %v2280 = vpop.f32.mrf.mxu0
      %v2281 = vpop.f32.mrf.mxu0
      %v2282 = vadd.f32 0.0, %v2281
      %v2283 = vpop.f32.mrf.mxu0
      %2284 = vmatprep.mubr.bf16.mxu0 %v2155
      %2285 = vmatmul.mubr.bf16.gmra.mxu0 %v2154
      %v2286 = vpop.f32.mrf.mxu0
      %v2287 = vadd.f32 0.0, %v2286
      %v2288 = vpop.f32.mrf.mxu0
      %v2289 = vpop.f32.mrf.mxu0
      %v2290 = vadd.f32 0.0, %v2289
      %v2291 = vpop.f32.mrf.mxu0
      %2292 = vmatprep.mubr.bf16.mxu0 %v2157
      %2293 = vmatmul.mubr.bf16.gmra.mxu0 %v2156
      %v2294 = vpop.f32.mrf.mxu0
      %v2295 = vadd.f32 0.0, %v2294
      %v2296 = vpop.f32.mrf.mxu0
      %v2297 = vpop.f32.mrf.mxu0
      %v2298 = vadd.f32 0.0, %v2297
      %v2299 = vpop.f32.mrf.mxu0
      %2300 = vmatprep.mubr.bf16.mxu0 %v2159
      %2301 = vmatmul.mubr.bf16.gmra.mxu0 %v2158
      %v2302 = vpop.f32.mrf.mxu0
      %v2303 = vadd.f32 0.0, %v2302
      %v2304 = vpop.f32.mrf.mxu0
      %v2305 = vpop.f32.mrf.mxu0
      %v2306 = vadd.f32 0.0, %v2305
      %v2307 = vpop.f32.mrf.mxu0
      %2308 = vmatprep.mubr.bf16.mxu0 %v2161
      %2309 = vmatmul.mubr.bf16.gmra.mxu0 %v2160
      %v2310 = vpop.f32.mrf.mxu0
      %v2311 = vadd.f32 0.0, %v2310
      %v2312 = vpop.f32.mrf.mxu0
      %v2313 = vpop.f32.mrf.mxu0
      %v2314 = vadd.f32 0.0, %v2313
      %v2315 = vpop.f32.mrf.mxu0
      %2316 = vmatprep.mubr.bf16.mxu0 %v2163
      %2317 = vmatmul.mubr.bf16.gmra.mxu0 %v2162
      %v2318 = vpop.f32.mrf.mxu0
      %v2319 = vadd.f32 0.0, %v2318
      %v2320 = vpop.f32.mrf.mxu0
      %v2321 = vpop.f32.mrf.mxu0
      %v2322 = vadd.f32 0.0, %v2321
      %v2323 = vpop.f32.mrf.mxu0
      %2324 = vdwg.mxu0
      %2325 = vst.msk [vmem:[%s473] sm:$0xff] %vm1362, %v2199
      %2326 = vst.msk [vmem:[%s473 + $0x8] sm:$0xff] %vm1362, %v2202
      %2327 = vst.msk [vmem:[%s473 + $0x10] sm:$0xff] %vm1362, %v2207
      %2328 = vst.msk [vmem:[%s473 + $0x18] sm:$0xff] %vm1362, %v2210
      %2329 = vst.msk [vmem:[%s473 + $0x20] sm:$0xff] %vm1362, %v2215
      %2330 = vst.msk [vmem:[%s473 + $0x28] sm:$0xff] %vm1362, %v2218
      %2331 = vst.msk [vmem:[%s473 + $0x30] sm:$0xff] %vm1362, %v2223
      %2332 = vst.msk [vmem:[%s473 + $0x38] sm:$0xff] %vm1362, %v2226
      %2333 = vst.msk [vmem:[%s473 + $0x40] sm:$0xff] %vm1362, %v2231
      %2334 = vst.msk [vmem:[%s473 + $0x48] sm:$0xff] %vm1362, %v2234
      %2335 = vst.msk [vmem:[%s473 + $0x50] sm:$0xff] %vm1362, %v2239
      %2336 = vst.msk [vmem:[%s473 + $0x58] sm:$0xff] %vm1362, %v2242
      %2337 = vst.msk [vmem:[%s473 + $0x60] sm:$0xff] %vm1362, %v2247
      %2338 = vst.msk [vmem:[%s473 + $0x68] sm:$0xff] %vm1362, %v2250
      %2339 = vst.msk [vmem:[%s473 + $0x70] sm:$0xff] %vm1362, %v2255
      %2340 = vst.msk [vmem:[%s473 + $0x78] sm:$0xff] %vm1362, %v2258
      %2341 = vst.msk [vmem:[%s473 + $0x80] sm:$0xff] %vm1362, %v2263
      %2342 = vst.msk [vmem:[%s473 + $0x88] sm:$0xff] %vm1362, %v2266
      %2343 = vst.msk [vmem:[%s473 + $0x90] sm:$0xff] %vm1362, %v2271
      %2344 = vst.msk [vmem:[%s473 + $0x98] sm:$0xff] %vm1362, %v2274
      %2345 = vst.msk [vmem:[%s473 + $0xa0] sm:$0xff] %vm1362, %v2279
      %2346 = vst.msk [vmem:[%s473 + $0xa8] sm:$0xff] %vm1362, %v2282
      %2347 = vst.msk [vmem:[%s473 + $0xb0] sm:$0xff] %vm1362, %v2287
      %2348 = vst.msk [vmem:[%s473 + $0xb8] sm:$0xff] %vm1362, %v2290
      %2349 = vst.msk [vmem:[%s473 + $0xc0] sm:$0xff] %vm1362, %v2295
      %2350 = vst.msk [vmem:[%s473 + $0xc8] sm:$0xff] %vm1362, %v2298
      %2351 = vst.msk [vmem:[%s473 + $0xd0] sm:$0xff] %vm1362, %v2303
      %2352 = vst.msk [vmem:[%s473 + $0xd8] sm:$0xff] %vm1362, %v2306
      %2353 = vst.msk [vmem:[%s473 + $0xe0] sm:$0xff] %vm1362, %v2311
      %2354 = vst.msk [vmem:[%s473 + $0xe8] sm:$0xff] %vm1362, %v2314
      %2355 = vst.msk [vmem:[%s473 + $0xf0] sm:$0xff] %vm1362, %v2319
      %2356 = vst.msk [vmem:[%s473 + $0xf8] sm:$0xff] %vm1362, %v2322
      %s2357 = smul.u32 32, %s26
      %p2358 = scmp.lt.s32.totalorder %s24, 1
      %s2359 = scalar_select %p2358, %s24, 1
      %p2360 = scmp.lt.s32.totalorder %s25, 1
      %s2361 = scalar_select %p2360, %s25, 1
      %p2362 = scmp.lt.s32.totalorder %s2357, 31
      %s2363 = scalar_select %p2362, %s2357, 31
      %s2364 = smul.addr %s2361, 32
      %s2365 = sadd.s32 %s2363, %s2364
      %s2366 = smul.addr %s2359, 64
      %s2367 = sadd.s32 %s2365, %s2366
      %s2368 = smul.addr %s2367, 8
      %s2369 = scalar_lea.vmem %s8, %s2368
      // Predicated region
      $region53: #{tpu_custom_call.1} parent=51 // pred_check
        %p2370 = pneg %p270
      $region54: #{tpu_custom_call.1} parent=51 // pred_check_branch
        %2372 = sbr.rel (%p2370) target = $region56
      $region55: #{tpu_custom_call.1} parent=51 // pred_region
        %s2373 = smul.u32 32, %s26
      $region56: #{tpu_custom_call.1} parent=51 // pred_fallthru
        _
    $region52: #{tpu_custom_call.1} parent=5 // pred_fallthru
      _
    %p2374 = scmp.le.s32.totalorder 2, %s14
    // Predicated region
    $region57: #{tpu_custom_call.1} parent=5 // pred_check
      %p2375 = pneg %p2374
    $region58: #{tpu_custom_call.1} parent=5 // pred_check_branch
      %2377 = sbr.rel (%p2375) target = $region60
    $region59: #{tpu_custom_call.1} parent=5 // pred_region
      %s2378 = ssub.s32 %s14, 2
      // Predicated region
      $region61: #{tpu_custom_call.1} parent=59 // pred_check
        %p2379 = pneg %p276
      $region62: #{tpu_custom_call.1} parent=59 // pred_check_branch
        %2381 = sbr.rel (%p2379) target = $region64
      $region63: #{tpu_custom_call.1} parent=59 // pred_region
        %s2382 = smul.u32 32, %s29
        %p2383 = scmp.lt.s32.totalorder %s27, 1
        %s2384 = scalar_select %p2383, %s27, 1
        %p2385 = scmp.lt.s32.totalorder %s28, 1
        %s2386 = scalar_select %p2385, %s28, 1
        %p2387 = scmp.lt.s32.totalorder %s2382, 31
        %s2388 = scalar_select %p2387, %s2382, 31
        %s2389 = smul.addr %s2386, 32
        %s2390 = sadd.s32 %s2388, %s2389
        %s2391 = smul.addr %s2384, 64
        %s2392 = sadd.s32 %s2390, %s2391
        %s2393 = smul.addr %s2392, 8
        %s2394 = scalar_lea.vmem %s8, %s2393
      $region64: #{tpu_custom_call.1} parent=59 // pred_fallthru
        _
    $region60: #{tpu_custom_call.1} parent=5 // pred_fallthru
      _
  $region6: #{tpu_custom_call.1} parent=0 // loop_footer
    %s18 = sadd.s32 1, %s14
  $region7: #{tpu_custom_call.1} parent=0 // loop_footer_branch
    %13 = sbr.rel target = $region3
  $region8: #{tpu_custom_call.1} parent=0 // loop_exit
    _

</llo_original>
